<compile_context>
chip_gen: v7x
topology: tpu7x:2x2x1
jax: 0.10.0
libtpu: 0.0.40
codegen_flags: <defaults>
</compile_context>

<pallas_src>
import numpy as np
import jax
import jax.numpy as jnp
from jax import lax
from jax.experimental import pallas as pl
from jax.experimental.pallas import tpu as pltpu


# ---------------------------------------------------------------------------
# GSConv channel-shuffle bookkeeping
# ---------------------------------------------------------------------------
def _shuffle_perm(c_):
    """out[:, j] = cat(x1, cv2(x1))[:, perm[j]]  (GSConv shuffle, c2 = 2*c_)."""
    return [2 * j if j < c_ else 2 * (j - c_) + 1 for j in range(2 * c_)]


def _silu(y):
    # SiLU with sigmoid = 0.5*tanh(0.5*y) + 0.5 : a single EUP transcendental, no divide.
    return y * (0.5 * jnp.tanh(0.5 * y) + 0.5)


def _src_masks_padded(H, W, G):
    """(5, H*W + 2G) float32.  Row dx is 1 where the padded source pixel may feed a tap
    with horizontal offset dx-2 without wrapping across image rows.  Values inside the
    zero-guard region are irrelevant (the guarded activation is zero there)."""
    HW = H * W
    L = HW + 2 * G
    col = np.mod(np.arange(L) - G, W)
    m = np.zeros((5, L), np.float32)
    for dx in range(5):
        d = dx - 2
        m[dx] = ((col - d >= 0) & (col - d < W)).astype(np.float32)
    return m


# ---------------------------------------------------------------------------
# Fused SDI kernel: all GSConv branches + shuffle + running product, one call
# ---------------------------------------------------------------------------
def _make_sdi_kernel(c1s, c_, H, W):
    nb = len(c1s)
    HW = H * W
    C2 = 2 * c_
    R = nb * C2                               # stacked rows: branch-major, output order
    G = ((2 * W + 2 + 127) // 128) * 128      # zero guard, multiple of 128 lanes
    BASE = G - (2 * W + 2)
    assert G >= 2 * W + 2

    def kernel(*refs):
        mask_ref = refs[0]
        x_refs = refs[1:1 + nb]
        w1_refs = refs[1 + nb:1 + 2 * nb]
        par_ref = refs[1 + 2 * nb]
        o_ref = refs[2 + 2 * nb]

        # par columns: 0:s1  1:b1  2..26:w2(5x5 flat)  27:s2  28:b2  29:is_x1_row
        par = par_ref[...]                                        # (R, 30)

        # ---- cv1: 1x1 conv + folded BN + SiLU, every branch/row at once ----------
        acc = None
        for i in range(nb):
            x = x_refs[i][0]                                      # (C1_i, HW) one load
            w = w1_refs[i][...]                                   # (R, C1_i), zero
            for ci in range(c1s[i]):                              #  outside branch i
                t = w[:, ci:ci + 1] * x[ci:ci + 1, :]             # (R,1)*(1,HW) FMA
                acc = t if acc is None else acc + t
        x1 = _silu(acc * par[:, 0:1] + par[:, 1:2])               # (R, HW), 1 EUP push

        # ---- cv2: depthwise 5x5 (pad=2) + folded BN + SiLU ------------------------
        zg = jnp.zeros((R, G), jnp.float32)
        x1p = jnp.concatenate([zg, x1, zg], axis=1)               # aligned lane concat
        mask = mask_ref[...]                                      # (5, HW + 2G)
        acc2 = None
        for dx in range(5):                                       # 4 mask muls / step
            xm = x1p if dx == 2 else mask[dx:dx + 1, :] * x1p
            for dy in range(5):
                k = dy * 5 + dx
                off = BASE + dy * W + dx
                t = par[:, 2 + k:3 + k] * xm[:, off:off + HW]     # tap shared by all rows
                acc2 = t if acc2 is None else acc2 + t
        x2b = _silu(acc2 * par[:, 27:28] + par[:, 28:29])         # (R, HW), 1 EUP push

        # ---- GSConv concat+shuffle (row order already = output order) + SDI prod --
        m1 = par[:, 29:30]
        sel = m1 * x1 + (1.0 - m1) * x2b                          # pick x1 / cv2 per row
        prod = sel[0:C2, :]
        for i in range(1, nb):
            prod = prod * sel[i * C2:(i + 1) * C2, :]             # running SDI product
        o_ref[0, :, :] = prod                                     # one unmasked store

    return kernel, G


def _build_param_arrays(params_list, c1s, c_):
    """Host-side packing: duplicated / output-ordered rows so the kernel needs no
    sublane shuffles.  Returns per-branch zero-extended 1x1 weights (R, C1_i) and the
    packed per-row parameter table (R, 30)."""
    nb = len(params_list)
    C2 = 2 * c_
    R = nb * C2
    perm = _shuffle_perm(c_)
    cdup = [m if m < c_ else m - c_ for m in perm]    # source channel for output row j
    is_x1 = [1.0 if m < c_ else 0.0 for m in perm]

    par = np.zeros((R, 30), np.float32)
    w1z = []
    for i, p in enumerate(params_list):
        w1 = np.asarray(p['w1'], np.float32)          # (c1, c_)
        w2 = np.asarray(p['w2'], np.float32).reshape(c_, 25)
        s1 = np.asarray(p['s1'], np.float32)
        b1 = np.asarray(p['b1'], np.float32)
        s2 = np.asarray(p['s2'], np.float32)
        b2 = np.asarray(p['b2'], np.float32)
        wz = np.zeros((R, c1s[i]), np.float32)
        for j in range(C2):
            r = i * C2 + j
            c = cdup[j]
            wz[r, :] = w1[:, c]
            par[r, 0], par[r, 1] = s1[c], b1[c]
            par[r, 2:27] = w2[c]
            par[r, 27], par[r, 28] = s2[c], b2[c]
            par[r, 29] = is_x1[j]
        w1z.append(jnp.asarray(wz))
    return w1z, jnp.asarray(par)


# ---------------------------------------------------------------------------
# Resize (PyTorch SDI semantics) as one precomputed spatial-matrix matmul
# ---------------------------------------------------------------------------
def _adaptive_pool_matrix(out_size, in_size):
    A = np.zeros((out_size, in_size), np.float32)
    for i in range(out_size):
        s = (i * in_size) // out_size
        e = -(-((i + 1) * in_size) // out_size)       # ceil
        A[i, s:e] = 1.0 / (e - s)
    return A


def _bilinear_matrix(out_size, in_size):
    B = np.zeros((out_size, in_size), np.float32)
    if out_size == 1:
        B[0, 0] = 1.0
        return B
    scale = (in_size - 1) / (out_size - 1)            # align_corners=True
    for i in range(out_size):
        src = i * scale
        i0 = min(int(np.floor(src)), in_size - 1)
        i1 = min(i0 + 1, in_size - 1)
        w = src - i0
        B[i, i0] += 1.0 - w
        B[i, i1] += w
    return B


def resize_flat(x, Ht, Wt):
    """adaptive_avg_pool2d (if wider) / bilinear align_corners=True (if narrower) /
    identity, dispatched on the last dim exactly like the PyTorch SDI module, emitted
    as one (N*C, HWin) @ (HWin, HWout) matmul -> lane-dense (N, C, Ht*Wt)."""
    N, C, H, W = x.shape
    if W == Wt:
        # Mirrors the reference module (dispatch on width only).
        return x.reshape(N, C, H * W)
    if W > Wt:
        Ah, Aw = _adaptive_pool_matrix(Ht, H), _adaptive_pool_matrix(Wt, W)
    else:
        Ah, Aw = _bilinear_matrix(Ht, H), _bilinear_matrix(Wt, W)
    M = np.kron(Ah, Aw).T.astype(np.float32)          # (H*W, Ht*Wt)
    xf = x.reshape(N * C, H * W)
    out = jnp.dot(xf, jnp.asarray(M), precision=lax.Precision.HIGHEST)
    return out.reshape(N, C, Ht * Wt)


# ---------------------------------------------------------------------------
# SDI forward: one fused Pallas call
# ---------------------------------------------------------------------------
def sdi_forward(xs, params_list):
    N, C0, Ht, Wt = xs[0].shape
    assert C0 % 2 == 0
    c_ = C0 // 2
    C2 = 2 * c_
    nb = len(xs)
    c1s = [int(x.shape[1]) for x in xs]
    HW = Ht * Wt

    kernel, G = _make_sdi_kernel(c1s, c_, Ht, Wt)
    HWP = HW + 2 * G
    R = nb * C2

    masks = jnp.asarray(_src_masks_padded(Ht, Wt, G))
    w1z, par = _build_param_arrays(params_list, c1s, c_)
    xflats = [resize_flat(x, Ht, Wt) for x in xs]

    in_specs = [pl.BlockSpec((5, HWP), lambda n: (0, 0))]
    in_specs += [pl.BlockSpec((1, c1, HW), lambda n: (n, 0, 0)) for c1 in c1s]
    in_specs += [pl.BlockSpec((R, c1), lambda n: (0, 0)) for c1 in c1s]
    in_specs += [pl.BlockSpec((R, 30), lambda n: (0, 0))]

    out = pl.pallas_call(
        kernel,
        out_shape=jax.ShapeDtypeStruct((N, C2, HW), jnp.float32),
        grid_spec=pltpu.PrefetchScalarGridSpec(
            num_scalar_prefetch=0,
            grid=(N,),                                # N >= 2 -> both v7x TensorCores
            in_specs=in_specs,
            out_specs=pl.BlockSpec((1, C2, HW), lambda n: (n, 0, 0)),
        ),
        compiler_params=pltpu.CompilerParams(
            dimension_semantics=("parallel",)),
    )(masks, *xflats, *w1z, par)
    return out.reshape(N, C0, Ht, Wt)


# ---------------------------------------------------------------------------
# Deterministic synthetic parameters (conv weights + folded BatchNorm)
# ---------------------------------------------------------------------------
def init_gsconv_params(key, c1, c2):
    c_ = c2 // 2
    k1, k2 = jax.random.split(key)
    w1 = 0.1 * jax.random.normal(k1, (c1, c_), jnp.float32)    # (Cin, Cout), 1x1 conv
    w2 = 0.1 * jax.random.normal(k2, (c_, 5, 5), jnp.float32)  # depthwise 5x5
    eps = 1e-5

    def bn_fold(c, offset):
        ar = jnp.arange(c, dtype=jnp.float32)
        gamma, beta = 1.0 + 0.1 * ar, 0.05 * ar + offset
        mean, var = 0.01 * ar, 1.0 + 0.02 * ar
        scale = gamma / jnp.sqrt(var + eps)
        return scale, beta - mean * scale

    s1, b1 = bn_fold(c_, 0.0)
    s2, b2 = bn_fold(c_, 0.02)
    return dict(w1=w1, s1=s1, b1=b1, w2=w2, s2=s2, b2=b2)


# ---------------------------------------------------------------------------
# Pure-JAX reference (correctness check only)
# ---------------------------------------------------------------------------
def ref_gsconv(x, p):
    c_ = p['w1'].shape[1]
    w1 = jnp.transpose(p['w1'])[:, :, None, None]
    y = lax.conv_general_dilated(x, w1, (1, 1), 'VALID',
                                 dimension_numbers=('NCHW', 'OIHW', 'NCHW'),
                                 precision=lax.Precision.HIGHEST)
    y = y * p['s1'][None, :, None, None] + p['b1'][None, :, None, None]
    x1 = y * jax.nn.sigmoid(y)
    w2 = p['w2'][:, None, :, :]
    y2 = lax.conv_general_dilated(x1, w2, (1, 1), ((2, 2), (2, 2)),
                                  dimension_numbers=('NCHW', 'OIHW', 'NCHW'),
                                  feature_group_count=c_,
                                  precision=lax.Precision.HIGHEST)
    y2 = y2 * p['s2'][None, :, None, None] + p['b2'][None, :, None, None]
    x2b = y2 * jax.nn.sigmoid(y2)
    x2 = jnp.concatenate([x1, x2b], axis=1)
    return x2[:, jnp.asarray(_shuffle_perm(c_)), :, :]


def ref_sdi(xs, params_list):
    N, C0, Ht, Wt = xs[0].shape
    ans = jnp.ones_like(xs[0])
    for x, p in zip(xs, params_list):
        xr = resize_flat(x, Ht, Wt).reshape(x.shape[0], x.shape[1], Ht, Wt)
        ans = ans * ref_gsconv(xr, p)
    return ans


# ---------------------------------------------------------------------------
if __name__ == "__main__":
    key = jax.random.PRNGKey(0)
    channels = [8, 6, 4]            # SDI([8, 6, 4]); every GSConv outputs channels[0]=8
    N, Ht, Wt = 2, 16, 16
    spatial = [16, 32, 8]           # xs[1] is avg-pooled down, xs[2] bilinearly upsampled

    keys = jax.random.split(key, 2 * len(channels))
    xs = [jax.random.normal(keys[i], (N, channels[i], spatial[i], spatial[i]), jnp.float32)
          for i in range(len(channels))]
    params = [init_gsconv_params(keys[len(channels) + i], channels[i], channels[0])
              for i in range(len(channels))]

    out = jax.block_until_ready(sdi_forward(xs, params))
    ref = jax.block_until_ready(ref_sdi(xs, params))

    assert out.shape == (N, channels[0], Ht, Wt)
    err = float(jnp.max(jnp.abs(out - ref)))
    assert jnp.allclose(out, ref, atol=2e-3, rtol=2e-3), f"max abs err = {err}"
    print("KERNEL_OK")
</pallas_src>

<mosaic_0001>
module attributes {stable_mosaic.version = 11 : i64} {
  func.func @kernel(%arg0: i32, %arg1: memref<5x512xf32, #tpu.memory_space<vmem>>, %arg2: memref<1x8x256xf32, #tpu.memory_space<vmem>>, %arg3: memref<1x6x256xf32, #tpu.memory_space<vmem>>, %arg4: memref<1x4x256xf32, #tpu.memory_space<vmem>>, %arg5: memref<24x8xf32, #tpu.memory_space<vmem>>, %arg6: memref<24x6xf32, #tpu.memory_space<vmem>>, %arg7: memref<24x4xf32, #tpu.memory_space<vmem>>, %arg8: memref<24x30xf32, #tpu.memory_space<vmem>>, %arg9: memref<1x8x256xf32, #tpu.memory_space<vmem>>) attributes {dimension_semantics = [#tpu.dimension_semantics<parallel>], iteration_bounds = array<i64: 2>, scalar_prefetch = 0 : i64, scratch_operands = 0 : i64, tpu.core_type = #tpu.core_type<tc>, window_params = [{pipeline_mode = #tpu.pipeline_mode<synchronous>, transform_indices = @transform_0, window_bounds = array<i64: 5, 512>}, {transform_indices = @transform_1, window_bounds = array<i64: 1, 8, 256>}, {transform_indices = @transform_2, window_bounds = array<i64: 1, 6, 256>}, {transform_indices = @transform_3, window_bounds = array<i64: 1, 4, 256>}, {pipeline_mode = #tpu.pipeline_mode<synchronous>, transform_indices = @transform_4, window_bounds = array<i64: 24, 8>}, {pipeline_mode = #tpu.pipeline_mode<synchronous>, transform_indices = @transform_5, window_bounds = array<i64: 24, 6>}, {pipeline_mode = #tpu.pipeline_mode<synchronous>, transform_indices = @transform_6, window_bounds = array<i64: 24, 4>}, {pipeline_mode = #tpu.pipeline_mode<synchronous>, transform_indices = @transform_7, window_bounds = array<i64: 24, 30>}, {transform_indices = @transform_8, window_bounds = array<i64: 1, 8, 256>}]} {
    %c0 = arith.constant 0 : index
    %c0_0 = arith.constant 0 : index
    %0 = vector.load %arg8[%c0, %c0_0] : memref<24x30xf32, #tpu.memory_space<vmem>>, vector<24x30xf32>
    %c0_1 = arith.constant 0 : index
    %c0_2 = arith.constant 0 : index
    %c0_3 = arith.constant 0 : index
    %1 = vector.load %arg2[%c0_1, %c0_2, %c0_3] : memref<1x8x256xf32, #tpu.memory_space<vmem>>, vector<1x8x256xf32>
    %2 = vector.shape_cast %1 : vector<1x8x256xf32> to vector<8x256xf32>
    %c0_4 = arith.constant 0 : index
    %c0_5 = arith.constant 0 : index
    %3 = vector.load %arg5[%c0_4, %c0_5] : memref<24x8xf32, #tpu.memory_space<vmem>>, vector<24x8xf32>
    %4 = vector.extract_strided_slice %3 {offsets = [0, 0], sizes = [24, 1], strides = [1, 1]} : vector<24x8xf32> to vector<24x1xf32>
    %5 = vector.extract_strided_slice %2 {offsets = [0, 0], sizes = [1, 256], strides = [1, 1]} : vector<8x256xf32> to vector<1x256xf32>
    %6 = vector.broadcast %4 : vector<24x1xf32> to vector<24x256xf32>
    %7 = vector.broadcast %5 : vector<1x256xf32> to vector<24x256xf32>
    %8 = arith.mulf %6, %7 : vector<24x256xf32>
    %9 = vector.extract_strided_slice %3 {offsets = [0, 1], sizes = [24, 1], strides = [1, 1]} : vector<24x8xf32> to vector<24x1xf32>
    %10 = vector.extract_strided_slice %2 {offsets = [1, 0], sizes = [1, 256], strides = [1, 1]} : vector<8x256xf32> to vector<1x256xf32>
    %11 = vector.broadcast %9 : vector<24x1xf32> to vector<24x256xf32>
    %12 = vector.broadcast %10 : vector<1x256xf32> to vector<24x256xf32>
    %13 = arith.mulf %11, %12 : vector<24x256xf32>
    %14 = arith.addf %8, %13 : vector<24x256xf32>
    %15 = vector.extract_strided_slice %3 {offsets = [0, 2], sizes = [24, 1], strides = [1, 1]} : vector<24x8xf32> to vector<24x1xf32>
    %16 = vector.extract_strided_slice %2 {offsets = [2, 0], sizes = [1, 256], strides = [1, 1]} : vector<8x256xf32> to vector<1x256xf32>
    %17 = vector.broadcast %15 : vector<24x1xf32> to vector<24x256xf32>
    %18 = vector.broadcast %16 : vector<1x256xf32> to vector<24x256xf32>
    %19 = arith.mulf %17, %18 : vector<24x256xf32>
    %20 = arith.addf %14, %19 : vector<24x256xf32>
    %21 = vector.extract_strided_slice %3 {offsets = [0, 3], sizes = [24, 1], strides = [1, 1]} : vector<24x8xf32> to vector<24x1xf32>
    %22 = vector.extract_strided_slice %2 {offsets = [3, 0], sizes = [1, 256], strides = [1, 1]} : vector<8x256xf32> to vector<1x256xf32>
    %23 = vector.broadcast %21 : vector<24x1xf32> to vector<24x256xf32>
    %24 = vector.broadcast %22 : vector<1x256xf32> to vector<24x256xf32>
    %25 = arith.mulf %23, %24 : vector<24x256xf32>
    %26 = arith.addf %20, %25 : vector<24x256xf32>
    %27 = vector.extract_strided_slice %3 {offsets = [0, 4], sizes = [24, 1], strides = [1, 1]} : vector<24x8xf32> to vector<24x1xf32>
    %28 = vector.extract_strided_slice %2 {offsets = [4, 0], sizes = [1, 256], strides = [1, 1]} : vector<8x256xf32> to vector<1x256xf32>
    %29 = vector.broadcast %27 : vector<24x1xf32> to vector<24x256xf32>
    %30 = vector.broadcast %28 : vector<1x256xf32> to vector<24x256xf32>
    %31 = arith.mulf %29, %30 : vector<24x256xf32>
    %32 = arith.addf %26, %31 : vector<24x256xf32>
    %33 = vector.extract_strided_slice %3 {offsets = [0, 5], sizes = [24, 1], strides = [1, 1]} : vector<24x8xf32> to vector<24x1xf32>
    %34 = vector.extract_strided_slice %2 {offsets = [5, 0], sizes = [1, 256], strides = [1, 1]} : vector<8x256xf32> to vector<1x256xf32>
    %35 = vector.broadcast %33 : vector<24x1xf32> to vector<24x256xf32>
    %36 = vector.broadcast %34 : vector<1x256xf32> to vector<24x256xf32>
    %37 = arith.mulf %35, %36 : vector<24x256xf32>
    %38 = arith.addf %32, %37 : vector<24x256xf32>
    %39 = vector.extract_strided_slice %3 {offsets = [0, 6], sizes = [24, 1], strides = [1, 1]} : vector<24x8xf32> to vector<24x1xf32>
    %40 = vector.extract_strided_slice %2 {offsets = [6, 0], sizes = [1, 256], strides = [1, 1]} : vector<8x256xf32> to vector<1x256xf32>
    %41 = vector.broadcast %39 : vector<24x1xf32> to vector<24x256xf32>
    %42 = vector.broadcast %40 : vector<1x256xf32> to vector<24x256xf32>
    %43 = arith.mulf %41, %42 : vector<24x256xf32>
    %44 = arith.addf %38, %43 : vector<24x256xf32>
    %45 = vector.extract_strided_slice %3 {offsets = [0, 7], sizes = [24, 1], strides = [1, 1]} : vector<24x8xf32> to vector<24x1xf32>
    %46 = vector.extract_strided_slice %2 {offsets = [7, 0], sizes = [1, 256], strides = [1, 1]} : vector<8x256xf32> to vector<1x256xf32>
    %47 = vector.broadcast %45 : vector<24x1xf32> to vector<24x256xf32>
    %48 = vector.broadcast %46 : vector<1x256xf32> to vector<24x256xf32>
    %49 = arith.mulf %47, %48 : vector<24x256xf32>
    %50 = arith.addf %44, %49 : vector<24x256xf32>
    %c0_6 = arith.constant 0 : index
    %c0_7 = arith.constant 0 : index
    %c0_8 = arith.constant 0 : index
    %51 = vector.load %arg3[%c0_6, %c0_7, %c0_8] : memref<1x6x256xf32, #tpu.memory_space<vmem>>, vector<1x6x256xf32>
    %52 = vector.shape_cast %51 : vector<1x6x256xf32> to vector<6x256xf32>
    %c0_9 = arith.constant 0 : index
    %c0_10 = arith.constant 0 : index
    %53 = vector.load %arg6[%c0_9, %c0_10] : memref<24x6xf32, #tpu.memory_space<vmem>>, vector<24x6xf32>
    %54 = vector.extract_strided_slice %53 {offsets = [0, 0], sizes = [24, 1], strides = [1, 1]} : vector<24x6xf32> to vector<24x1xf32>
    %55 = vector.extract_strided_slice %52 {offsets = [0, 0], sizes = [1, 256], strides = [1, 1]} : vector<6x256xf32> to vector<1x256xf32>
    %56 = vector.broadcast %54 : vector<24x1xf32> to vector<24x256xf32>
    %57 = vector.broadcast %55 : vector<1x256xf32> to vector<24x256xf32>
    %58 = arith.mulf %56, %57 : vector<24x256xf32>
    %59 = arith.addf %50, %58 : vector<24x256xf32>
    %60 = vector.extract_strided_slice %53 {offsets = [0, 1], sizes = [24, 1], strides = [1, 1]} : vector<24x6xf32> to vector<24x1xf32>
    %61 = vector.extract_strided_slice %52 {offsets = [1, 0], sizes = [1, 256], strides = [1, 1]} : vector<6x256xf32> to vector<1x256xf32>
    %62 = vector.broadcast %60 : vector<24x1xf32> to vector<24x256xf32>
    %63 = vector.broadcast %61 : vector<1x256xf32> to vector<24x256xf32>
    %64 = arith.mulf %62, %63 : vector<24x256xf32>
    %65 = arith.addf %59, %64 : vector<24x256xf32>
    %66 = vector.extract_strided_slice %53 {offsets = [0, 2], sizes = [24, 1], strides = [1, 1]} : vector<24x6xf32> to vector<24x1xf32>
    %67 = vector.extract_strided_slice %52 {offsets = [2, 0], sizes = [1, 256], strides = [1, 1]} : vector<6x256xf32> to vector<1x256xf32>
    %68 = vector.broadcast %66 : vector<24x1xf32> to vector<24x256xf32>
    %69 = vector.broadcast %67 : vector<1x256xf32> to vector<24x256xf32>
    %70 = arith.mulf %68, %69 : vector<24x256xf32>
    %71 = arith.addf %65, %70 : vector<24x256xf32>
    %72 = vector.extract_strided_slice %53 {offsets = [0, 3], sizes = [24, 1], strides = [1, 1]} : vector<24x6xf32> to vector<24x1xf32>
    %73 = vector.extract_strided_slice %52 {offsets = [3, 0], sizes = [1, 256], strides = [1, 1]} : vector<6x256xf32> to vector<1x256xf32>
    %74 = vector.broadcast %72 : vector<24x1xf32> to vector<24x256xf32>
    %75 = vector.broadcast %73 : vector<1x256xf32> to vector<24x256xf32>
    %76 = arith.mulf %74, %75 : vector<24x256xf32>
    %77 = arith.addf %71, %76 : vector<24x256xf32>
    %78 = vector.extract_strided_slice %53 {offsets = [0, 4], sizes = [24, 1], strides = [1, 1]} : vector<24x6xf32> to vector<24x1xf32>
    %79 = vector.extract_strided_slice %52 {offsets = [4, 0], sizes = [1, 256], strides = [1, 1]} : vector<6x256xf32> to vector<1x256xf32>
    %80 = vector.broadcast %78 : vector<24x1xf32> to vector<24x256xf32>
    %81 = vector.broadcast %79 : vector<1x256xf32> to vector<24x256xf32>
    %82 = arith.mulf %80, %81 : vector<24x256xf32>
    %83 = arith.addf %77, %82 : vector<24x256xf32>
    %84 = vector.extract_strided_slice %53 {offsets = [0, 5], sizes = [24, 1], strides = [1, 1]} : vector<24x6xf32> to vector<24x1xf32>
    %85 = vector.extract_strided_slice %52 {offsets = [5, 0], sizes = [1, 256], strides = [1, 1]} : vector<6x256xf32> to vector<1x256xf32>
    %86 = vector.broadcast %84 : vector<24x1xf32> to vector<24x256xf32>
    %87 = vector.broadcast %85 : vector<1x256xf32> to vector<24x256xf32>
    %88 = arith.mulf %86, %87 : vector<24x256xf32>
    %89 = arith.addf %83, %88 : vector<24x256xf32>
    %c0_11 = arith.constant 0 : index
    %c0_12 = arith.constant 0 : index
    %c0_13 = arith.constant 0 : index
    %90 = vector.load %arg4[%c0_11, %c0_12, %c0_13] : memref<1x4x256xf32, #tpu.memory_space<vmem>>, vector<1x4x256xf32>
    %91 = vector.shape_cast %90 : vector<1x4x256xf32> to vector<4x256xf32>
    %c0_14 = arith.constant 0 : index
    %c0_15 = arith.constant 0 : index
    %92 = vector.load %arg7[%c0_14, %c0_15] : memref<24x4xf32, #tpu.memory_space<vmem>>, vector<24x4xf32>
    %93 = vector.extract_strided_slice %92 {offsets = [0, 0], sizes = [24, 1], strides = [1, 1]} : vector<24x4xf32> to vector<24x1xf32>
    %94 = vector.extract_strided_slice %91 {offsets = [0, 0], sizes = [1, 256], strides = [1, 1]} : vector<4x256xf32> to vector<1x256xf32>
    %95 = vector.broadcast %93 : vector<24x1xf32> to vector<24x256xf32>
    %96 = vector.broadcast %94 : vector<1x256xf32> to vector<24x256xf32>
    %97 = arith.mulf %95, %96 : vector<24x256xf32>
    %98 = arith.addf %89, %97 : vector<24x256xf32>
    %99 = vector.extract_strided_slice %92 {offsets = [0, 1], sizes = [24, 1], strides = [1, 1]} : vector<24x4xf32> to vector<24x1xf32>
    %100 = vector.extract_strided_slice %91 {offsets = [1, 0], sizes = [1, 256], strides = [1, 1]} : vector<4x256xf32> to vector<1x256xf32>
    %101 = vector.broadcast %99 : vector<24x1xf32> to vector<24x256xf32>
    %102 = vector.broadcast %100 : vector<1x256xf32> to vector<24x256xf32>
    %103 = arith.mulf %101, %102 : vector<24x256xf32>
    %104 = arith.addf %98, %103 : vector<24x256xf32>
    %105 = vector.extract_strided_slice %92 {offsets = [0, 2], sizes = [24, 1], strides = [1, 1]} : vector<24x4xf32> to vector<24x1xf32>
    %106 = vector.extract_strided_slice %91 {offsets = [2, 0], sizes = [1, 256], strides = [1, 1]} : vector<4x256xf32> to vector<1x256xf32>
    %107 = vector.broadcast %105 : vector<24x1xf32> to vector<24x256xf32>
    %108 = vector.broadcast %106 : vector<1x256xf32> to vector<24x256xf32>
    %109 = arith.mulf %107, %108 : vector<24x256xf32>
    %110 = arith.addf %104, %109 : vector<24x256xf32>
    %111 = vector.extract_strided_slice %92 {offsets = [0, 3], sizes = [24, 1], strides = [1, 1]} : vector<24x4xf32> to vector<24x1xf32>
    %112 = vector.extract_strided_slice %91 {offsets = [3, 0], sizes = [1, 256], strides = [1, 1]} : vector<4x256xf32> to vector<1x256xf32>
    %113 = vector.broadcast %111 : vector<24x1xf32> to vector<24x256xf32>
    %114 = vector.broadcast %112 : vector<1x256xf32> to vector<24x256xf32>
    %115 = arith.mulf %113, %114 : vector<24x256xf32>
    %116 = arith.addf %110, %115 : vector<24x256xf32>
    %117 = vector.extract_strided_slice %0 {offsets = [0, 0], sizes = [24, 1], strides = [1, 1]} : vector<24x30xf32> to vector<24x1xf32>
    %118 = vector.broadcast %117 : vector<24x1xf32> to vector<24x256xf32>
    %119 = arith.mulf %116, %118 : vector<24x256xf32>
    %120 = vector.extract_strided_slice %0 {offsets = [0, 1], sizes = [24, 1], strides = [1, 1]} : vector<24x30xf32> to vector<24x1xf32>
    %121 = vector.broadcast %120 : vector<24x1xf32> to vector<24x256xf32>
    %122 = arith.addf %119, %121 : vector<24x256xf32>
    %cst = arith.constant 5.000000e-01 : f32
    %123 = vector.broadcast %cst : f32 to vector<24x256xf32>
    %124 = arith.mulf %123, %122 : vector<24x256xf32>
    %125 = math.tanh %124 : vector<24x256xf32>
    %cst_16 = arith.constant 5.000000e-01 : f32
    %126 = vector.broadcast %cst_16 : f32 to vector<24x256xf32>
    %127 = arith.mulf %126, %125 : vector<24x256xf32>
    %cst_17 = arith.constant 5.000000e-01 : f32
    %128 = vector.broadcast %cst_17 : f32 to vector<24x256xf32>
    %129 = arith.addf %127, %128 : vector<24x256xf32>
    %130 = arith.mulf %122, %129 : vector<24x256xf32>
    %cst_18 = arith.constant 0.000000e+00 : f32
    %131 = vector.broadcast %cst_18 : f32 to vector<24x128xf32>
    %132 = tpu.concatenate %131, %130, %131 in 1 : vector<24x128xf32>, vector<24x256xf32>, vector<24x128xf32> -> vector<24x512xf32>
    %c0_19 = arith.constant 0 : index
    %c0_20 = arith.constant 0 : index
    %133 = vector.load %arg1[%c0_19, %c0_20] : memref<5x512xf32, #tpu.memory_space<vmem>>, vector<5x512xf32>
    %134 = vector.extract_strided_slice %133 {offsets = [0, 0], sizes = [1, 512], strides = [1, 1]} : vector<5x512xf32> to vector<1x512xf32>
    %135 = vector.broadcast %134 : vector<1x512xf32> to vector<24x512xf32>
    %136 = arith.mulf %135, %132 : vector<24x512xf32>
    %137 = vector.extract_strided_slice %0 {offsets = [0, 2], sizes = [24, 1], strides = [1, 1]} : vector<24x30xf32> to vector<24x1xf32>
    %138 = vector.extract_strided_slice %136 {offsets = [0, 94], sizes = [24, 256], strides = [1, 1]} : vector<24x512xf32> to vector<24x256xf32>
    %139 = vector.broadcast %137 : vector<24x1xf32> to vector<24x256xf32>
    %140 = arith.mulf %139, %138 : vector<24x256xf32>
    %141 = vector.extract_strided_slice %0 {offsets = [0, 7], sizes = [24, 1], strides = [1, 1]} : vector<24x30xf32> to vector<24x1xf32>
    %142 = vector.extract_strided_slice %136 {offsets = [0, 110], sizes = [24, 256], strides = [1, 1]} : vector<24x512xf32> to vector<24x256xf32>
    %143 = vector.broadcast %141 : vector<24x1xf32> to vector<24x256xf32>
    %144 = arith.mulf %143, %142 : vector<24x256xf32>
    %145 = arith.addf %140, %144 : vector<24x256xf32>
    %146 = vector.extract_strided_slice %0 {offsets = [0, 12], sizes = [24, 1], strides = [1, 1]} : vector<24x30xf32> to vector<24x1xf32>
    %147 = vector.extract_strided_slice %136 {offsets = [0, 126], sizes = [24, 256], strides = [1, 1]} : vector<24x512xf32> to vector<24x256xf32>
    %148 = vector.broadcast %146 : vector<24x1xf32> to vector<24x256xf32>
    %149 = arith.mulf %148, %147 : vector<24x256xf32>
    %150 = arith.addf %145, %149 : vector<24x256xf32>
    %151 = vector.extract_strided_slice %0 {offsets = [0, 17], sizes = [24, 1], strides = [1, 1]} : vector<24x30xf32> to vector<24x1xf32>
    %152 = vector.extract_strided_slice %136 {offsets = [0, 142], sizes = [24, 256], strides = [1, 1]} : vector<24x512xf32> to vector<24x256xf32>
    %153 = vector.broadcast %151 : vector<24x1xf32> to vector<24x256xf32>
    %154 = arith.mulf %153, %152 : vector<24x256xf32>
    %155 = arith.addf %150, %154 : vector<24x256xf32>
    %156 = vector.extract_strided_slice %0 {offsets = [0, 22], sizes = [24, 1], strides = [1, 1]} : vector<24x30xf32> to vector<24x1xf32>
    %157 = vector.extract_strided_slice %136 {offsets = [0, 158], sizes = [24, 256], strides = [1, 1]} : vector<24x512xf32> to vector<24x256xf32>
    %158 = vector.broadcast %156 : vector<24x1xf32> to vector<24x256xf32>
    %159 = arith.mulf %158, %157 : vector<24x256xf32>
    %160 = arith.addf %155, %159 : vector<24x256xf32>
    %161 = vector.extract_strided_slice %133 {offsets = [1, 0], sizes = [1, 512], strides = [1, 1]} : vector<5x512xf32> to vector<1x512xf32>
    %162 = vector.broadcast %161 : vector<1x512xf32> to vector<24x512xf32>
    %163 = arith.mulf %162, %132 : vector<24x512xf32>
    %164 = vector.extract_strided_slice %0 {offsets = [0, 3], sizes = [24, 1], strides = [1, 1]} : vector<24x30xf32> to vector<24x1xf32>
    %165 = vector.extract_strided_slice %163 {offsets = [0, 95], sizes = [24, 256], strides = [1, 1]} : vector<24x512xf32> to vector<24x256xf32>
    %166 = vector.broadcast %164 : vector<24x1xf32> to vector<24x256xf32>
    %167 = arith.mulf %166, %165 : vector<24x256xf32>
    %168 = arith.addf %160, %167 : vector<24x256xf32>
    %169 = vector.extract_strided_slice %0 {offsets = [0, 8], sizes = [24, 1], strides = [1, 1]} : vector<24x30xf32> to vector<24x1xf32>
    %170 = vector.extract_strided_slice %163 {offsets = [0, 111], sizes = [24, 256], strides = [1, 1]} : vector<24x512xf32> to vector<24x256xf32>
    %171 = vector.broadcast %169 : vector<24x1xf32> to vector<24x256xf32>
    %172 = arith.mulf %171, %170 : vector<24x256xf32>
    %173 = arith.addf %168, %172 : vector<24x256xf32>
    %174 = vector.extract_strided_slice %0 {offsets = [0, 13], sizes = [24, 1], strides = [1, 1]} : vector<24x30xf32> to vector<24x1xf32>
    %175 = vector.extract_strided_slice %163 {offsets = [0, 127], sizes = [24, 256], strides = [1, 1]} : vector<24x512xf32> to vector<24x256xf32>
    %176 = vector.broadcast %174 : vector<24x1xf32> to vector<24x256xf32>
    %177 = arith.mulf %176, %175 : vector<24x256xf32>
    %178 = arith.addf %173, %177 : vector<24x256xf32>
    %179 = vector.extract_strided_slice %0 {offsets = [0, 18], sizes = [24, 1], strides = [1, 1]} : vector<24x30xf32> to vector<24x1xf32>
    %180 = vector.extract_strided_slice %163 {offsets = [0, 143], sizes = [24, 256], strides = [1, 1]} : vector<24x512xf32> to vector<24x256xf32>
    %181 = vector.broadcast %179 : vector<24x1xf32> to vector<24x256xf32>
    %182 = arith.mulf %181, %180 : vector<24x256xf32>
    %183 = arith.addf %178, %182 : vector<24x256xf32>
    %184 = vector.extract_strided_slice %0 {offsets = [0, 23], sizes = [24, 1], strides = [1, 1]} : vector<24x30xf32> to vector<24x1xf32>
    %185 = vector.extract_strided_slice %163 {offsets = [0, 159], sizes = [24, 256], strides = [1, 1]} : vector<24x512xf32> to vector<24x256xf32>
    %186 = vector.broadcast %184 : vector<24x1xf32> to vector<24x256xf32>
    %187 = arith.mulf %186, %185 : vector<24x256xf32>
    %188 = arith.addf %183, %187 : vector<24x256xf32>
    %189 = vector.extract_strided_slice %0 {offsets = [0, 4], sizes = [24, 1], strides = [1, 1]} : vector<24x30xf32> to vector<24x1xf32>
    %190 = vector.extract_strided_slice %132 {offsets = [0, 96], sizes = [24, 256], strides = [1, 1]} : vector<24x512xf32> to vector<24x256xf32>
    %191 = vector.broadcast %189 : vector<24x1xf32> to vector<24x256xf32>
    %192 = arith.mulf %191, %190 : vector<24x256xf32>
    %193 = arith.addf %188, %192 : vector<24x256xf32>
    %194 = vector.extract_strided_slice %0 {offsets = [0, 9], sizes = [24, 1], strides = [1, 1]} : vector<24x30xf32> to vector<24x1xf32>
    %195 = vector.extract_strided_slice %132 {offsets = [0, 112], sizes = [24, 256], strides = [1, 1]} : vector<24x512xf32> to vector<24x256xf32>
    %196 = vector.broadcast %194 : vector<24x1xf32> to vector<24x256xf32>
    %197 = arith.mulf %196, %195 : vector<24x256xf32>
    %198 = arith.addf %193, %197 : vector<24x256xf32>
    %199 = vector.extract_strided_slice %0 {offsets = [0, 14], sizes = [24, 1], strides = [1, 1]} : vector<24x30xf32> to vector<24x1xf32>
    %200 = vector.extract_strided_slice %132 {offsets = [0, 128], sizes = [24, 256], strides = [1, 1]} : vector<24x512xf32> to vector<24x256xf32>
    %201 = vector.broadcast %199 : vector<24x1xf32> to vector<24x256xf32>
    %202 = arith.mulf %201, %200 : vector<24x256xf32>
    %203 = arith.addf %198, %202 : vector<24x256xf32>
    %204 = vector.extract_strided_slice %0 {offsets = [0, 19], sizes = [24, 1], strides = [1, 1]} : vector<24x30xf32> to vector<24x1xf32>
    %205 = vector.extract_strided_slice %132 {offsets = [0, 144], sizes = [24, 256], strides = [1, 1]} : vector<24x512xf32> to vector<24x256xf32>
    %206 = vector.broadcast %204 : vector<24x1xf32> to vector<24x256xf32>
    %207 = arith.mulf %206, %205 : vector<24x256xf32>
    %208 = arith.addf %203, %207 : vector<24x256xf32>
    %209 = vector.extract_strided_slice %0 {offsets = [0, 24], sizes = [24, 1], strides = [1, 1]} : vector<24x30xf32> to vector<24x1xf32>
    %210 = vector.extract_strided_slice %132 {offsets = [0, 160], sizes = [24, 256], strides = [1, 1]} : vector<24x512xf32> to vector<24x256xf32>
    %211 = vector.broadcast %209 : vector<24x1xf32> to vector<24x256xf32>
    %212 = arith.mulf %211, %210 : vector<24x256xf32>
    %213 = arith.addf %208, %212 : vector<24x256xf32>
    %214 = vector.extract_strided_slice %133 {offsets = [3, 0], sizes = [1, 512], strides = [1, 1]} : vector<5x512xf32> to vector<1x512xf32>
    %215 = vector.broadcast %214 : vector<1x512xf32> to vector<24x512xf32>
    %216 = arith.mulf %215, %132 : vector<24x512xf32>
    %217 = vector.extract_strided_slice %0 {offsets = [0, 5], sizes = [24, 1], strides = [1, 1]} : vector<24x30xf32> to vector<24x1xf32>
    %218 = vector.extract_strided_slice %216 {offsets = [0, 97], sizes = [24, 256], strides = [1, 1]} : vector<24x512xf32> to vector<24x256xf32>
    %219 = vector.broadcast %217 : vector<24x1xf32> to vector<24x256xf32>
    %220 = arith.mulf %219, %218 : vector<24x256xf32>
    %221 = arith.addf %213, %220 : vector<24x256xf32>
    %222 = vector.extract_strided_slice %0 {offsets = [0, 10], sizes = [24, 1], strides = [1, 1]} : vector<24x30xf32> to vector<24x1xf32>
    %223 = vector.extract_strided_slice %216 {offsets = [0, 113], sizes = [24, 256], strides = [1, 1]} : vector<24x512xf32> to vector<24x256xf32>
    %224 = vector.broadcast %222 : vector<24x1xf32> to vector<24x256xf32>
    %225 = arith.mulf %224, %223 : vector<24x256xf32>
    %226 = arith.addf %221, %225 : vector<24x256xf32>
    %227 = vector.extract_strided_slice %0 {offsets = [0, 15], sizes = [24, 1], strides = [1, 1]} : vector<24x30xf32> to vector<24x1xf32>
    %228 = vector.extract_strided_slice %216 {offsets = [0, 129], sizes = [24, 256], strides = [1, 1]} : vector<24x512xf32> to vector<24x256xf32>
    %229 = vector.broadcast %227 : vector<24x1xf32> to vector<24x256xf32>
    %230 = arith.mulf %229, %228 : vector<24x256xf32>
    %231 = arith.addf %226, %230 : vector<24x256xf32>
    %232 = vector.extract_strided_slice %0 {offsets = [0, 20], sizes = [24, 1], strides = [1, 1]} : vector<24x30xf32> to vector<24x1xf32>
    %233 = vector.extract_strided_slice %216 {offsets = [0, 145], sizes = [24, 256], strides = [1, 1]} : vector<24x512xf32> to vector<24x256xf32>
    %234 = vector.broadcast %232 : vector<24x1xf32> to vector<24x256xf32>
    %235 = arith.mulf %234, %233 : vector<24x256xf32>
    %236 = arith.addf %231, %235 : vector<24x256xf32>
    %237 = vector.extract_strided_slice %0 {offsets = [0, 25], sizes = [24, 1], strides = [1, 1]} : vector<24x30xf32> to vector<24x1xf32>
    %238 = vector.extract_strided_slice %216 {offsets = [0, 161], sizes = [24, 256], strides = [1, 1]} : vector<24x512xf32> to vector<24x256xf32>
    %239 = vector.broadcast %237 : vector<24x1xf32> to vector<24x256xf32>
    %240 = arith.mulf %239, %238 : vector<24x256xf32>
    %241 = arith.addf %236, %240 : vector<24x256xf32>
    %242 = vector.extract_strided_slice %133 {offsets = [4, 0], sizes = [1, 512], strides = [1, 1]} : vector<5x512xf32> to vector<1x512xf32>
    %243 = vector.broadcast %242 : vector<1x512xf32> to vector<24x512xf32>
    %244 = arith.mulf %243, %132 : vector<24x512xf32>
    %245 = vector.extract_strided_slice %0 {offsets = [0, 6], sizes = [24, 1], strides = [1, 1]} : vector<24x30xf32> to vector<24x1xf32>
    %246 = vector.extract_strided_slice %244 {offsets = [0, 98], sizes = [24, 256], strides = [1, 1]} : vector<24x512xf32> to vector<24x256xf32>
    %247 = vector.broadcast %245 : vector<24x1xf32> to vector<24x256xf32>
    %248 = arith.mulf %247, %246 : vector<24x256xf32>
    %249 = arith.addf %241, %248 : vector<24x256xf32>
    %250 = vector.extract_strided_slice %0 {offsets = [0, 11], sizes = [24, 1], strides = [1, 1]} : vector<24x30xf32> to vector<24x1xf32>
    %251 = vector.extract_strided_slice %244 {offsets = [0, 114], sizes = [24, 256], strides = [1, 1]} : vector<24x512xf32> to vector<24x256xf32>
    %252 = vector.broadcast %250 : vector<24x1xf32> to vector<24x256xf32>
    %253 = arith.mulf %252, %251 : vector<24x256xf32>
    %254 = arith.addf %249, %253 : vector<24x256xf32>
    %255 = vector.extract_strided_slice %0 {offsets = [0, 16], sizes = [24, 1], strides = [1, 1]} : vector<24x30xf32> to vector<24x1xf32>
    %256 = vector.extract_strided_slice %244 {offsets = [0, 130], sizes = [24, 256], strides = [1, 1]} : vector<24x512xf32> to vector<24x256xf32>
    %257 = vector.broadcast %255 : vector<24x1xf32> to vector<24x256xf32>
    %258 = arith.mulf %257, %256 : vector<24x256xf32>
    %259 = arith.addf %254, %258 : vector<24x256xf32>
    %260 = vector.extract_strided_slice %0 {offsets = [0, 21], sizes = [24, 1], strides = [1, 1]} : vector<24x30xf32> to vector<24x1xf32>
    %261 = vector.extract_strided_slice %244 {offsets = [0, 146], sizes = [24, 256], strides = [1, 1]} : vector<24x512xf32> to vector<24x256xf32>
    %262 = vector.broadcast %260 : vector<24x1xf32> to vector<24x256xf32>
    %263 = arith.mulf %262, %261 : vector<24x256xf32>
    %264 = arith.addf %259, %263 : vector<24x256xf32>
    %265 = vector.extract_strided_slice %0 {offsets = [0, 26], sizes = [24, 1], strides = [1, 1]} : vector<24x30xf32> to vector<24x1xf32>
    %266 = vector.extract_strided_slice %244 {offsets = [0, 162], sizes = [24, 256], strides = [1, 1]} : vector<24x512xf32> to vector<24x256xf32>
    %267 = vector.broadcast %265 : vector<24x1xf32> to vector<24x256xf32>
    %268 = arith.mulf %267, %266 : vector<24x256xf32>
    %269 = arith.addf %264, %268 : vector<24x256xf32>
    %270 = vector.extract_strided_slice %0 {offsets = [0, 27], sizes = [24, 1], strides = [1, 1]} : vector<24x30xf32> to vector<24x1xf32>
    %271 = vector.broadcast %270 : vector<24x1xf32> to vector<24x256xf32>
    %272 = arith.mulf %269, %271 : vector<24x256xf32>
    %273 = vector.extract_strided_slice %0 {offsets = [0, 28], sizes = [24, 1], strides = [1, 1]} : vector<24x30xf32> to vector<24x1xf32>
    %274 = vector.broadcast %273 : vector<24x1xf32> to vector<24x256xf32>
    %275 = arith.addf %272, %274 : vector<24x256xf32>
    %cst_21 = arith.constant 5.000000e-01 : f32
    %276 = vector.broadcast %cst_21 : f32 to vector<24x256xf32>
    %277 = arith.mulf %276, %275 : vector<24x256xf32>
    %278 = math.tanh %277 : vector<24x256xf32>
    %cst_22 = arith.constant 5.000000e-01 : f32
    %279 = vector.broadcast %cst_22 : f32 to vector<24x256xf32>
    %280 = arith.mulf %279, %278 : vector<24x256xf32>
    %cst_23 = arith.constant 5.000000e-01 : f32
    %281 = vector.broadcast %cst_23 : f32 to vector<24x256xf32>
    %282 = arith.addf %280, %281 : vector<24x256xf32>
    %283 = arith.mulf %275, %282 : vector<24x256xf32>
    %284 = vector.extract_strided_slice %0 {offsets = [0, 29], sizes = [24, 1], strides = [1, 1]} : vector<24x30xf32> to vector<24x1xf32>
    %285 = vector.broadcast %284 : vector<24x1xf32> to vector<24x256xf32>
    %286 = arith.mulf %285, %130 : vector<24x256xf32>
    %cst_24 = arith.constant 1.000000e+00 : f32
    %287 = vector.broadcast %cst_24 : f32 to vector<24x1xf32>
    %288 = arith.subf %287, %284 : vector<24x1xf32>
    %289 = vector.broadcast %288 : vector<24x1xf32> to vector<24x256xf32>
    %290 = arith.mulf %289, %283 : vector<24x256xf32>
    %291 = arith.addf %286, %290 : vector<24x256xf32>
    %292 = vector.extract_strided_slice %291 {offsets = [0, 0], sizes = [8, 256], strides = [1, 1]} : vector<24x256xf32> to vector<8x256xf32>
    %293 = vector.extract_strided_slice %291 {offsets = [8, 0], sizes = [8, 256], strides = [1, 1]} : vector<24x256xf32> to vector<8x256xf32>
    %294 = arith.mulf %292, %293 : vector<8x256xf32>
    %295 = vector.extract_strided_slice %291 {offsets = [16, 0], sizes = [8, 256], strides = [1, 1]} : vector<24x256xf32> to vector<8x256xf32>
    %296 = arith.mulf %294, %295 : vector<8x256xf32>
    %c0_25 = arith.constant 0 : index
    %c0_26 = arith.constant 0 : index
    %c0_27 = arith.constant 0 : index
    %297 = vector.load %arg9[%c0_25, %c0_26, %c0_27] : memref<1x8x256xf32, #tpu.memory_space<vmem>>, vector<1x8x256xf32>
    %298 = vector.shape_cast %297 : vector<1x8x256xf32> to vector<8x256xf32>
    %299 = vector.shape_cast %296 : vector<8x256xf32> to vector<1x8x256xf32>
    tpu.vector_store %arg9[%c0_25, %c0_26, %c0_27], %299 {strides = array<i32>} : memref<1x8x256xf32, #tpu.memory_space<vmem>>, vector<1x8x256xf32>,
    return
  }
  func.func @transform_0(%arg0: i32) -> (i32, i32) {
    %c0_i32 = arith.constant 0 : i32
    %c0_i32_0 = arith.constant 0 : i32
    %c0_i32_1 = arith.constant 0 : i32
    return %c0_i32, %c0_i32_0 : i32, i32
  }
  func.func @transform_1(%arg0: i32) -> (i32, i32, i32) {
    %c0_i32 = arith.constant 0 : i32
    %c0_i32_0 = arith.constant 0 : i32
    %c0_i32_1 = arith.constant 0 : i32
    return %arg0, %c0_i32, %c0_i32_0 : i32, i32, i32
  }
  func.func @transform_2(%arg0: i32) -> (i32, i32, i32) {
    %c0_i32 = arith.constant 0 : i32
    %c0_i32_0 = arith.constant 0 : i32
    %c0_i32_1 = arith.constant 0 : i32
    return %arg0, %c0_i32, %c0_i32_0 : i32, i32, i32
  }
  func.func @transform_3(%arg0: i32) -> (i32, i32, i32) {
    %c0_i32 = arith.constant 0 : i32
    %c0_i32_0 = arith.constant 0 : i32
    %c0_i32_1 = arith.constant 0 : i32
    return %arg0, %c0_i32, %c0_i32_0 : i32, i32, i32
  }
  func.func @transform_4(%arg0: i32) -> (i32, i32) {
    %c0_i32 = arith.constant 0 : i32
    %c0_i32_0 = arith.constant 0 : i32
    %c0_i32_1 = arith.constant 0 : i32
    return %c0_i32, %c0_i32_0 : i32, i32
  }
  func.func @transform_5(%arg0: i32) -> (i32, i32) {
    %c0_i32 = arith.constant 0 : i32
    %c0_i32_0 = arith.constant 0 : i32
    %c0_i32_1 = arith.constant 0 : i32
    return %c0_i32, %c0_i32_0 : i32, i32
  }
  func.func @transform_6(%arg0: i32) -> (i32, i32) {
    %c0_i32 = arith.constant 0 : i32
    %c0_i32_0 = arith.constant 0 : i32
    %c0_i32_1 = arith.constant 0 : i32
    return %c0_i32, %c0_i32_0 : i32, i32
  }
  func.func @transform_7(%arg0: i32) -> (i32, i32) {
    %c0_i32 = arith.constant 0 : i32
    %c0_i32_0 = arith.constant 0 : i32
    %c0_i32_1 = arith.constant 0 : i32
    return %c0_i32, %c0_i32_0 : i32, i32
  }
  func.func @transform_8(%arg0: i32) -> (i32, i32, i32) {
    %c0_i32 = arith.constant 0 : i32
    %c0_i32_0 = arith.constant 0 : i32
    %c0_i32_1 = arith.constant 0 : i32
    return %arg0, %c0_i32, %c0_i32_0 : i32, i32, i32
  }
}

</mosaic_0001>

<llo_original>
// kernel: tpu_custom_call.1
$region0: #{tpu_custom_call.1}
  #allocation0 [shape = 'u32[]', space=smem, size = 0x4, offset = 0x4, fixed_abs, tag = 'smem constant byte address 0x4 - core index']
  #allocation1 [shape = 'u32[144,128]{1,0:T(1,128)}', space=vmem, size = 0x12000, scoped, tag = 'internal scratch']
  %s0 = inlined_call_operand.vmem [shape: f32[5,512], index: 0, kind: input, shape index: {}]
  %s1 = inlined_call_operand.vmem [shape: f32[2,8,256], index: 1, kind: input, shape index: {}]
  %s2 = inlined_call_operand.vmem [shape: f32[2,6,256], index: 2, kind: input, shape index: {}]
  %s3 = inlined_call_operand.vmem [shape: f32[2,4,256], index: 3, kind: input, shape index: {}]
  %s4 = inlined_call_operand.vmem [shape: f32[24,8], index: 4, kind: input, shape index: {}]
  %s5 = inlined_call_operand.vmem [shape: f32[24,6], index: 5, kind: input, shape index: {}]
  %s6 = inlined_call_operand.vmem [shape: f32[24,4], index: 6, kind: input, shape index: {}]
  %s7 = inlined_call_operand.vmem [shape: f32[24,30], index: 7, kind: input, shape index: {}]
  %s8 = inlined_call_operand.hbm [shape: f32[2,8,256], index: 8, kind: output, shape index: {}]
  %s9 = sld [smem:[#allocation0]]
  $region65: #{tpu_custom_call.1} parent=0
    _
  %s11 = ssub.s32 1, %s9
  %s12 = scalar_select 0, %s11, %s9
  $region1: #{tpu_custom_call.1} parent=0
    #allocation2 [shape = 'u8[16384]{0}', space=vmem, size = 0x4000, scoped, tag = 'output window, operand 0']
    #allocation3 [shape = 's32[2]{0}', space=sflag, size = 0x8, scoped, tag = 'scoped memory for tpu_custom_call.1']
    %13 = vsyncpa [#allocation3], 0
    %s14 = scalar_lea.sflag [#allocation3], 1
    %15 = vsyncpa %s14, 0
    loop: start=0, step=1, limit=4
    $region2: #{tpu_custom_call.1} parent=1 // loop_pre_header
      _
    $region3: #{tpu_custom_call.1} parent=1 // loop_header
      %s17 = sphi 0, %s21
      %p18 = scmp.ge.s32.totalorder %s17, 4
      %s25 = sphi 0, %s25
      %s27 = sphi 0, %s25
      %s28 = sphi 0, %s27
      %s42 = sphi 0, %s28
      %s48 = sphi 0, %s50
      %s51 = sphi 0, %s48
      %s52 = sphi 0, %s51
      %s68 = sphi 0, %s52
      %s74 = sphi 0, %s76
      %s77 = sphi 0, %s74
      %s78 = sphi 0, %s77
      %s94 = sphi 0, %s78
      %s100 = sphi 0, %s102
      %s103 = sphi 0, %s100
      %s104 = sphi 0, %s103
      %s120 = sphi 0, %s104
      %s124 = sphi 0, %s124
      %s126 = sphi 0, %s124
      %s127 = sphi 0, %s126
      %s141 = sphi 0, %s127
      %s145 = sphi 0, %s145
      %s147 = sphi 0, %s145
      %s148 = sphi 0, %s147
      %s162 = sphi 0, %s148
      %s166 = sphi 0, %s166
      %s168 = sphi 0, %s166
      %s169 = sphi 0, %s168
      %s183 = sphi 0, %s169
      %s187 = sphi 0, %s187
      %s189 = sphi 0, %s187
      %s190 = sphi 0, %s189
      %s204 = sphi 0, %s190
      %s210 = sphi 0, %s212
      %s213 = sphi 0, %s210
      %s214 = sphi 0, %s213
      %s230 = sphi 0, %s214
    $region4: #{tpu_custom_call.1} parent=1 // loop_header_branch
      %20 = sbr.rel (%p18) target = $region8
    $region5: #{tpu_custom_call.1} parent=1 // loop_body
      %s22 = ssub.s32 %s17, 1
      %s23 = ssub.s32 %s17, 2
      %s24 = sadd.s32 %s17, 1
      %s26 = sadd.s32 %s25, 1
      %p29 = scmp.eq.s32.totalorder %s17, 1
      %p30 = scmp.ne.s32.totalorder %s25, %s27
      %p31 = scmp.eq.s32.totalorder %s17, 0
      %p32 = por %p30, %p31
      %p33 = scmp.ne.s32.totalorder %s25, %s27
      %p34 = scmp.eq.s32.totalorder %s22, 1
      %p35 = por %p33, %p34
      %p36 = scmp.ne.s32.totalorder %s27, %s28
      %p37 = scmp.eq.s32.totalorder %s22, 0
      %p38 = por %p36, %p37
      %p39 = scmp.ne.s32.totalorder %s27, %s28
      %p40 = scmp.eq.s32.totalorder %s23, 1
      %p41 = por %p39, %p40
      %p43 = scmp.ne.s32.totalorder %s28, %s42
      %p44 = scmp.eq.s32.totalorder %s23, 0
      %p45 = por %p43, %p44
      %s46 = ssub.s32 %s17, %s24
      %p47 = scmp.eq.s32.totalorder %s46, 0
      %s49 = sadd.s32 %s48, 1
      %s50 = scalar_select %p47, %s48, %s49
      %p53 = pneg %p47
      %p54 = scmp.eq.s32.totalorder %s17, 1
      %p55 = por %p53, %p54
      %p56 = scmp.ne.s32.totalorder %s48, %s51
      %p57 = scmp.eq.s32.totalorder %s17, 0
      %p58 = por %p56, %p57
      %p59 = scmp.ne.s32.totalorder %s48, %s51
      %p60 = scmp.eq.s32.totalorder %s22, 1
      %p61 = por %p59, %p60
      %p62 = scmp.ne.s32.totalorder %s51, %s52
      %p63 = scmp.eq.s32.totalorder %s22, 0
      %p64 = por %p62, %p63
      %p65 = scmp.ne.s32.totalorder %s51, %s52
      %p66 = scmp.eq.s32.totalorder %s23, 1
      %p67 = por %p65, %p66
      %p69 = scmp.ne.s32.totalorder %s52, %s68
      %p70 = scmp.eq.s32.totalorder %s23, 0
      %p71 = por %p69, %p70
      %s72 = ssub.s32 %s17, %s24
      %p73 = scmp.eq.s32.totalorder %s72, 0
      %s75 = sadd.s32 %s74, 1
      %s76 = scalar_select %p73, %s74, %s75
      %p79 = pneg %p73
      %p80 = scmp.eq.s32.totalorder %s17, 1
      %p81 = por %p79, %p80
      %p82 = scmp.ne.s32.totalorder %s74, %s77
      %p83 = scmp.eq.s32.totalorder %s17, 0
      %p84 = por %p82, %p83
      %p85 = scmp.ne.s32.totalorder %s74, %s77
      %p86 = scmp.eq.s32.totalorder %s22, 1
      %p87 = por %p85, %p86
      %p88 = scmp.ne.s32.totalorder %s77, %s78
      %p89 = scmp.eq.s32.totalorder %s22, 0
      %p90 = por %p88, %p89
      %p91 = scmp.ne.s32.totalorder %s77, %s78
      %p92 = scmp.eq.s32.totalorder %s23, 1
      %p93 = por %p91, %p92
      %p95 = scmp.ne.s32.totalorder %s78, %s94
      %p96 = scmp.eq.s32.totalorder %s23, 0
      %p97 = por %p95, %p96
      %s98 = ssub.s32 %s17, %s24
      %p99 = scmp.eq.s32.totalorder %s98, 0
      %s101 = sadd.s32 %s100, 1
      %s102 = scalar_select %p99, %s100, %s101
      %p105 = pneg %p99
      %p106 = scmp.eq.s32.totalorder %s17, 1
      %p107 = por %p105, %p106
      %p108 = scmp.ne.s32.totalorder %s100, %s103
      %p109 = scmp.eq.s32.totalorder %s17, 0
      %p110 = por %p108, %p109
      %p111 = scmp.ne.s32.totalorder %s100, %s103
      %p112 = scmp.eq.s32.totalorder %s22, 1
      %p113 = por %p111, %p112
      %p114 = scmp.ne.s32.totalorder %s103, %s104
      %p115 = scmp.eq.s32.totalorder %s22, 0
      %p116 = por %p114, %p115
      %p117 = scmp.ne.s32.totalorder %s103, %s104
      %p118 = scmp.eq.s32.totalorder %s23, 1
      %p119 = por %p117, %p118
      %p121 = scmp.ne.s32.totalorder %s104, %s120
      %p122 = scmp.eq.s32.totalorder %s23, 0
      %p123 = por %p121, %p122
      %s125 = sadd.s32 %s124, 1
      %p128 = scmp.eq.s32.totalorder %s17, 1
      %p129 = scmp.ne.s32.totalorder %s124, %s126
      %p130 = scmp.eq.s32.totalorder %s17, 0
      %p131 = por %p129, %p130
      %p132 = scmp.ne.s32.totalorder %s124, %s126
      %p133 = scmp.eq.s32.totalorder %s22, 1
      %p134 = por %p132, %p133
      %p135 = scmp.ne.s32.totalorder %s126, %s127
      %p136 = scmp.eq.s32.totalorder %s22, 0
      %p137 = por %p135, %p136
      %p138 = scmp.ne.s32.totalorder %s126, %s127
      %p139 = scmp.eq.s32.totalorder %s23, 1
      %p140 = por %p138, %p139
      %p142 = scmp.ne.s32.totalorder %s127, %s141
      %p143 = scmp.eq.s32.totalorder %s23, 0
      %p144 = por %p142, %p143
      %s146 = sadd.s32 %s145, 1
      %p149 = scmp.eq.s32.totalorder %s17, 1
      %p150 = scmp.ne.s32.totalorder %s145, %s147
      %p151 = scmp.eq.s32.totalorder %s17, 0
      %p152 = por %p150, %p151
      %p153 = scmp.ne.s32.totalorder %s145, %s147
      %p154 = scmp.eq.s32.totalorder %s22, 1
      %p155 = por %p153, %p154
      %p156 = scmp.ne.s32.totalorder %s147, %s148
      %p157 = scmp.eq.s32.totalorder %s22, 0
      %p158 = por %p156, %p157
      %p159 = scmp.ne.s32.totalorder %s147, %s148
      %p160 = scmp.eq.s32.totalorder %s23, 1
      %p161 = por %p159, %p160
      %p163 = scmp.ne.s32.totalorder %s148, %s162
      %p164 = scmp.eq.s32.totalorder %s23, 0
      %p165 = por %p163, %p164
      %s167 = sadd.s32 %s166, 1
      %p170 = scmp.eq.s32.totalorder %s17, 1
      %p171 = scmp.ne.s32.totalorder %s166, %s168
      %p172 = scmp.eq.s32.totalorder %s17, 0
      %p173 = por %p171, %p172
      %p174 = scmp.ne.s32.totalorder %s166, %s168
      %p175 = scmp.eq.s32.totalorder %s22, 1
      %p176 = por %p174, %p175
      %p177 = scmp.ne.s32.totalorder %s168, %s169
      %p178 = scmp.eq.s32.totalorder %s22, 0
      %p179 = por %p177, %p178
      %p180 = scmp.ne.s32.totalorder %s168, %s169
      %p181 = scmp.eq.s32.totalorder %s23, 1
      %p182 = por %p180, %p181
      %p184 = scmp.ne.s32.totalorder %s169, %s183
      %p185 = scmp.eq.s32.totalorder %s23, 0
      %p186 = por %p184, %p185
      %s188 = sadd.s32 %s187, 1
      %p191 = scmp.eq.s32.totalorder %s17, 1
      %p192 = scmp.ne.s32.totalorder %s187, %s189
      %p193 = scmp.eq.s32.totalorder %s17, 0
      %p194 = por %p192, %p193
      %p195 = scmp.ne.s32.totalorder %s187, %s189
      %p196 = scmp.eq.s32.totalorder %s22, 1
      %p197 = por %p195, %p196
      %p198 = scmp.ne.s32.totalorder %s189, %s190
      %p199 = scmp.eq.s32.totalorder %s22, 0
      %p200 = por %p198, %p199
      %p201 = scmp.ne.s32.totalorder %s189, %s190
      %p202 = scmp.eq.s32.totalorder %s23, 1
      %p203 = por %p201, %p202
      %p205 = scmp.ne.s32.totalorder %s190, %s204
      %p206 = scmp.eq.s32.totalorder %s23, 0
      %p207 = por %p205, %p206
      %s208 = ssub.s32 %s17, %s24
      %p209 = scmp.eq.s32.totalorder %s208, 0
      %s211 = sadd.s32 %s210, 1
      %s212 = scalar_select %p209, %s210, %s211
      %p215 = pneg %p209
      %p216 = scmp.eq.s32.totalorder %s17, 1
      %p217 = por %p215, %p216
      %p218 = scmp.ne.s32.totalorder %s210, %s213
      %p219 = scmp.eq.s32.totalorder %s17, 0
      %p220 = por %p218, %p219
      %p221 = scmp.ne.s32.totalorder %s210, %s213
      %p222 = scmp.eq.s32.totalorder %s22, 1
      %p223 = por %p221, %p222
      %p224 = scmp.ne.s32.totalorder %s213, %s214
      %p225 = scmp.eq.s32.totalorder %s22, 0
      %p226 = por %p224, %p225
      %p227 = scmp.ne.s32.totalorder %s213, %s214
      %p228 = scmp.eq.s32.totalorder %s23, 1
      %p229 = por %p227, %p228
      %p231 = scmp.ne.s32.totalorder %s214, %s230
      %p232 = scmp.eq.s32.totalorder %s23, 0
      %p233 = por %p231, %p232
      %p234 = scmp.le.s32.totalorder 1, %s17
      %p235 = scmp.lt.s32.totalorder %s17, 3
      %p236 = pnand %p234, %p235
      %p237 = pneg %p236
      // Predicated region
      $region9: #{tpu_custom_call.1} parent=5 // pred_check
        _
      $region10: #{tpu_custom_call.1} parent=5 // pred_check_branch
        %239 = sbr.rel (%p236) target = $region12
      $region11: #{tpu_custom_call.1} parent=5 // pred_region
        %s240 = ssub.s32 %s17, 1
        // Predicated region
        $region13: #{tpu_custom_call.1} parent=11 // pred_check
          %p241 = pneg %p38
        $region14: #{tpu_custom_call.1} parent=11 // pred_check_branch
          %243 = sbr.rel (%p241) target = $region16
        $region15: #{tpu_custom_call.1} parent=11 // pred_region
          _
        $region16: #{tpu_custom_call.1} parent=11 // pred_fallthru
          _
        // Predicated region
        $region17: #{tpu_custom_call.1} parent=11 // pred_check
          %p244 = pneg %p137
        $region18: #{tpu_custom_call.1} parent=11 // pred_check_branch
          %246 = sbr.rel (%p244) target = $region20
        $region19: #{tpu_custom_call.1} parent=11 // pred_region
          _
        $region20: #{tpu_custom_call.1} parent=11 // pred_fallthru
          _
        // Predicated region
        $region21: #{tpu_custom_call.1} parent=11 // pred_check
          %p247 = pneg %p158
        $region22: #{tpu_custom_call.1} parent=11 // pred_check_branch
          %249 = sbr.rel (%p247) target = $region24
        $region23: #{tpu_custom_call.1} parent=11 // pred_region
          _
        $region24: #{tpu_custom_call.1} parent=11 // pred_fallthru
          _
        // Predicated region
        $region25: #{tpu_custom_call.1} parent=11 // pred_check
          %p250 = pneg %p179
        $region26: #{tpu_custom_call.1} parent=11 // pred_check_branch
          %252 = sbr.rel (%p250) target = $region28
        $region27: #{tpu_custom_call.1} parent=11 // pred_region
          _
        $region28: #{tpu_custom_call.1} parent=11 // pred_fallthru
          _
        // Predicated region
        $region29: #{tpu_custom_call.1} parent=11 // pred_check
          %p253 = pneg %p200
        $region30: #{tpu_custom_call.1} parent=11 // pred_check_branch
          %255 = sbr.rel (%p253) target = $region32
        $region31: #{tpu_custom_call.1} parent=11 // pred_region
          _
        $region32: #{tpu_custom_call.1} parent=11 // pred_fallthru
          _
      $region12: #{tpu_custom_call.1} parent=5 // pred_fallthru
        _
      %p256 = scmp.lt.s32.totalorder %s17, 2
      // Predicated region
      $region33: #{tpu_custom_call.1} parent=5 // pred_check
        %p257 = pneg %p256
      $region34: #{tpu_custom_call.1} parent=5 // pred_check_branch
        %259 = sbr.rel (%p257) target = $region36
      $region35: #{tpu_custom_call.1} parent=5 // pred_region
        // Predicated region
        $region37: #{tpu_custom_call.1} parent=35 // pred_check
          %p260 = pneg %p58
        $region38: #{tpu_custom_call.1} parent=35 // pred_check_branch
          %262 = sbr.rel (%p260) target = $region40
        $region39: #{tpu_custom_call.1} parent=35 // pred_region
          %p263 = scmp.lt.s32.totalorder %s17, 1
          %s264 = scalar_select %p263, %s17, 1
          %s265 = smul.addr %s264, 2
          %s266 = smul.addr %s265, 8
          %s267 = scalar_lea.vmem %s1, %s266
        $region40: #{tpu_custom_call.1} parent=35 // pred_fallthru
          _
        // Predicated region
        $region41: #{tpu_custom_call.1} parent=35 // pred_check
          %p268 = pneg %p84
        $region42: #{tpu_custom_call.1} parent=35 // pred_check_branch
          %270 = sbr.rel (%p268) target = $region44
        $region43: #{tpu_custom_call.1} parent=35 // pred_region
          %p271 = scmp.lt.s32.totalorder %s17, 1
          %s272 = scalar_select %p271, %s17, 1
          %s273 = smul.addr %s272, 2
          %s274 = smul.addr %s273, 8
          %s275 = scalar_lea.vmem %s2, %s274
        $region44: #{tpu_custom_call.1} parent=35 // pred_fallthru
          _
        // Predicated region
        $region45: #{tpu_custom_call.1} parent=35 // pred_check
          %p276 = pneg %p110
        $region46: #{tpu_custom_call.1} parent=35 // pred_check_branch
          %278 = sbr.rel (%p276) target = $region48
        $region47: #{tpu_custom_call.1} parent=35 // pred_region
          %p279 = scmp.lt.s32.totalorder %s17, 1
          %s280 = scalar_select %p279, %s17, 1
          %s281 = smul.addr %s280, 2
          %s282 = smul.addr %s281, 4
          %s283 = scalar_lea.vmem %s3, %s282
        $region48: #{tpu_custom_call.1} parent=35 // pred_fallthru
          _
      $region36: #{tpu_custom_call.1} parent=5 // pred_fallthru
        _
      %p284 = scmp.le.s32.totalorder 1, %s17
      %p285 = scmp.lt.s32.totalorder %s17, 3
      %p286 = pnand %p284, %p285
      %p287 = pneg %p286
      // Predicated region
      $region49: #{tpu_custom_call.1} parent=5 // pred_check
        _
      $region50: #{tpu_custom_call.1} parent=5 // pred_check_branch
        %289 = sbr.rel (%p286) target = $region52
      $region51: #{tpu_custom_call.1} parent=5 // pred_region
        %s290 = ssub.s32 %s17, 1
        %p291 = pneg %p38
        %p292 = pneg %p35
        %p293 = scmp.lt.s32.totalorder %s22, 1
        %s294 = scalar_select %p293, %s22, 1
        %s295 = smul.addr %s294, 2
        %s296 = smul.addr %s295, 8
        %s297 = scalar_lea.vmem %s1, %s296
        %p298 = pneg %p64
        %p299 = pneg %p61
        %p300 = scmp.lt.s32.totalorder %s22, 1
        %s301 = scalar_select %p300, %s22, 1
        %s302 = smul.addr %s301, 2
        %s303 = smul.addr %s302, 8
        %s304 = scalar_lea.vmem %s2, %s303
        %p305 = pneg %p90
        %p306 = pneg %p87
        %p307 = scmp.lt.s32.totalorder %s22, 1
        %s308 = scalar_select %p307, %s22, 1
        %s309 = smul.addr %s308, 2
        %s310 = smul.addr %s309, 4
        %s311 = scalar_lea.vmem %s3, %s310
        %p312 = pneg %p116
        %p313 = pneg %p113
        %p314 = pneg %p137
        %p315 = pneg %p134
        %p316 = pneg %p158
        %p317 = pneg %p155
        %p318 = pneg %p179
        %p319 = pneg %p176
        %p320 = pneg %p200
        %p321 = pneg %p197
        %p322 = pneg %p226
        %p323 = pneg %p223
        %s324 = sand.u32 %s213, 1
        %s325 = scalar_lea.sflag [#allocation3], %s324
        %s326 = sand.u32 %s213, 1
        %s327 = smul.addr %s326, 16
        %s328 = scalar_lea.vmem [#allocation2], %s327
        %p329 = scmp.lt.s32.totalorder %s22, 1
        %s330 = scalar_select %p329, %s22, 1
        %s331 = smul.addr %s330, 2
        %s332 = smul.addr %s331, 8
        %s333 = scalar_lea.vmem %s1, %s332
        %p334 = scmp.lt.s32.totalorder %s22, 1
        %s335 = scalar_select %p334, %s22, 1
        %s336 = smul.addr %s335, 2
        %s337 = smul.addr %s336, 8
        %s338 = scalar_lea.vmem %s2, %s337
        %p339 = scmp.lt.s32.totalorder %s22, 1
        %s340 = scalar_select %p339, %s22, 1
        %s341 = smul.addr %s340, 2
        %s342 = smul.addr %s341, 4
        %s343 = scalar_lea.vmem %s3, %s342
        %v344 = vld [vmem:[%s7] sm:$0xff]
        %v345 = vld [vmem:[%s7 + $0x8] sm:$0xff]
        %v346 = vld [vmem:[%s7 + $0x10] sm:$0xff]
        %v347 = vld [vmem:[%s333] sm:$0xff]
        %v348 = vld [vmem:[%s333 + $0x8] sm:$0xff]
        %v349 = vld [vmem:[%s4] sm:$0xff]
        %v350 = vld [vmem:[%s4 + $0x8] sm:$0xff]
        %v351 = vld [vmem:[%s4 + $0x10] sm:$0xff]
        %353 = vset.pattern.permute.xlu0 0
        %354 = vperm.xlu0 %353, %v349
        %v355 = vpop.permute.xlu0 %354
        %358 = vset.pattern.permute.xlu0 0
        %359 = vperm.xlu0 %358, %v350
        %v360 = vpop.permute.xlu0 %359
        %363 = vset.pattern.permute.xlu0 0
        %364 = vperm.xlu0 %363, %v351
        %v365 = vpop.permute.xlu0 %364
        %v367 = vlaneseq
        %v368 = vshrl.u32 %v367, 7
        %v369 = vsub.s32 0, %v368
        %v370 = vrot.slane %v347, %v369
        %v371 = vlaneseq
        %v372 = vshrl.u32 %v371, 7
        %v373 = vsub.s32 0, %v372
        %v374 = vrot.slane %v348, %v373
        %v375 = vmul.f32 %v355, %v370
        %v376 = vmul.f32 %v355, %v374
        %v377 = vmul.f32 %v360, %v370
        %v378 = vmul.f32 %v360, %v374
        %v379 = vmul.f32 %v365, %v370
        %v380 = vmul.f32 %v365, %v374
        %381 = vset.pattern.permute.xlu0 1
        %382 = vperm.xlu0 %381, %v349
        %v383 = vpop.permute.xlu0 %382
        %385 = vset.pattern.permute.xlu0 1
        %386 = vperm.xlu0 %385, %v350
        %v387 = vpop.permute.xlu0 %386
        %389 = vset.pattern.permute.xlu0 1
        %390 = vperm.xlu0 %389, %v351
        %v391 = vpop.permute.xlu0 %390
        %v393 = vlaneseq
        %v394 = vshrl.u32 %v393, 7
        %v395 = vsub.s32 1, %v394
        %v396 = vrot.slane %v347, %v395
        %v397 = vlaneseq
        %v398 = vshrl.u32 %v397, 7
        %v399 = vsub.s32 1, %v398
        %v400 = vrot.slane %v348, %v399
        %v401 = vmul.f32 %v383, %v396
        %v402 = vmul.f32 %v383, %v400
        %v403 = vmul.f32 %v387, %v396
        %v404 = vmul.f32 %v387, %v400
        %v405 = vmul.f32 %v391, %v396
        %v406 = vmul.f32 %v391, %v400
        %v407 = vadd.f32 %v375, %v401
        %v408 = vadd.f32 %v376, %v402
        %v409 = vadd.f32 %v377, %v403
        %v410 = vadd.f32 %v378, %v404
        %v411 = vadd.f32 %v379, %v405
        %v412 = vadd.f32 %v380, %v406
        %413 = vset.pattern.permute.xlu0 2
        %414 = vperm.xlu0 %413, %v349
        %v415 = vpop.permute.xlu0 %414
        %417 = vset.pattern.permute.xlu0 2
        %418 = vperm.xlu0 %417, %v350
        %v419 = vpop.permute.xlu0 %418
        %421 = vset.pattern.permute.xlu0 2
        %422 = vperm.xlu0 %421, %v351
        %v423 = vpop.permute.xlu0 %422
        %v425 = vlaneseq
        %v426 = vshrl.u32 %v425, 7
        %v427 = vsub.s32 2, %v426
        %v428 = vrot.slane %v347, %v427
        %v429 = vlaneseq
        %v430 = vshrl.u32 %v429, 7
        %v431 = vsub.s32 2, %v430
        %v432 = vrot.slane %v348, %v431
        %v433 = vmul.f32 %v415, %v428
        %v434 = vmul.f32 %v415, %v432
        %v435 = vmul.f32 %v419, %v428
        %v436 = vmul.f32 %v419, %v432
        %v437 = vmul.f32 %v423, %v428
        %v438 = vmul.f32 %v423, %v432
        %v439 = vadd.f32 %v407, %v433
        %v440 = vadd.f32 %v408, %v434
        %v441 = vadd.f32 %v409, %v435
        %v442 = vadd.f32 %v410, %v436
        %v443 = vadd.f32 %v411, %v437
        %v444 = vadd.f32 %v412, %v438
        %445 = vset.pattern.permute.xlu0 3
        %446 = vperm.xlu0 %445, %v349
        %v447 = vpop.permute.xlu0 %446
        %449 = vset.pattern.permute.xlu0 3
        %450 = vperm.xlu0 %449, %v350
        %v451 = vpop.permute.xlu0 %450
        %453 = vset.pattern.permute.xlu0 3
        %454 = vperm.xlu0 %453, %v351
        %v455 = vpop.permute.xlu0 %454
        %v457 = vlaneseq
        %v458 = vshrl.u32 %v457, 7
        %v459 = vsub.s32 3, %v458
        %v460 = vrot.slane %v347, %v459
        %v461 = vlaneseq
        %v462 = vshrl.u32 %v461, 7
        %v463 = vsub.s32 3, %v462
        %v464 = vrot.slane %v348, %v463
        %v465 = vmul.f32 %v447, %v460
        %v466 = vmul.f32 %v447, %v464
        %v467 = vmul.f32 %v451, %v460
        %v468 = vmul.f32 %v451, %v464
        %v469 = vmul.f32 %v455, %v460
        %v470 = vmul.f32 %v455, %v464
        %v471 = vadd.f32 %v439, %v465
        %v472 = vadd.f32 %v440, %v466
        %v473 = vadd.f32 %v441, %v467
        %v474 = vadd.f32 %v442, %v468
        %v475 = vadd.f32 %v443, %v469
        %v476 = vadd.f32 %v444, %v470
        %477 = vset.pattern.permute.xlu0 4
        %478 = vperm.xlu0 %477, %v349
        %v479 = vpop.permute.xlu0 %478
        %481 = vset.pattern.permute.xlu0 4
        %482 = vperm.xlu0 %481, %v350
        %v483 = vpop.permute.xlu0 %482
        %485 = vset.pattern.permute.xlu0 4
        %486 = vperm.xlu0 %485, %v351
        %v487 = vpop.permute.xlu0 %486
        %v489 = vlaneseq
        %v490 = vshrl.u32 %v489, 7
        %v491 = vsub.s32 4, %v490
        %v492 = vrot.slane %v347, %v491
        %v493 = vlaneseq
        %v494 = vshrl.u32 %v493, 7
        %v495 = vsub.s32 4, %v494
        %v496 = vrot.slane %v348, %v495
        %v497 = vmul.f32 %v479, %v492
        %v498 = vmul.f32 %v479, %v496
        %v499 = vmul.f32 %v483, %v492
        %v500 = vmul.f32 %v483, %v496
        %v501 = vmul.f32 %v487, %v492
        %v502 = vmul.f32 %v487, %v496
        %v503 = vadd.f32 %v471, %v497
        %v504 = vadd.f32 %v472, %v498
        %v505 = vadd.f32 %v473, %v499
        %v506 = vadd.f32 %v474, %v500
        %v507 = vadd.f32 %v475, %v501
        %v508 = vadd.f32 %v476, %v502
        %509 = vset.pattern.permute.xlu0 5
        %510 = vperm.xlu0 %509, %v349
        %v511 = vpop.permute.xlu0 %510
        %513 = vset.pattern.permute.xlu0 5
        %514 = vperm.xlu0 %513, %v350
        %v515 = vpop.permute.xlu0 %514
        %517 = vset.pattern.permute.xlu0 5
        %518 = vperm.xlu0 %517, %v351
        %v519 = vpop.permute.xlu0 %518
        %v521 = vlaneseq
        %v522 = vshrl.u32 %v521, 7
        %v523 = vsub.s32 5, %v522
        %v524 = vrot.slane %v347, %v523
        %v525 = vlaneseq
        %v526 = vshrl.u32 %v525, 7
        %v527 = vsub.s32 5, %v526
        %v528 = vrot.slane %v348, %v527
        %v529 = vmul.f32 %v511, %v524
        %v530 = vmul.f32 %v511, %v528
        %v531 = vmul.f32 %v515, %v524
        %v532 = vmul.f32 %v515, %v528
        %v533 = vmul.f32 %v519, %v524
        %v534 = vmul.f32 %v519, %v528
        %v535 = vadd.f32 %v503, %v529
        %v536 = vadd.f32 %v504, %v530
        %v537 = vadd.f32 %v505, %v531
        %v538 = vadd.f32 %v506, %v532
        %v539 = vadd.f32 %v507, %v533
        %v540 = vadd.f32 %v508, %v534
        %541 = vset.pattern.permute.xlu0 6
        %542 = vperm.xlu0 %541, %v349
        %v543 = vpop.permute.xlu0 %542
        %545 = vset.pattern.permute.xlu0 6
        %546 = vperm.xlu0 %545, %v350
        %v547 = vpop.permute.xlu0 %546
        %549 = vset.pattern.permute.xlu0 6
        %550 = vperm.xlu0 %549, %v351
        %v551 = vpop.permute.xlu0 %550
        %v553 = vlaneseq
        %v554 = vshrl.u32 %v553, 7
        %v555 = vsub.s32 6, %v554
        %v556 = vrot.slane %v347, %v555
        %v557 = vlaneseq
        %v558 = vshrl.u32 %v557, 7
        %v559 = vsub.s32 6, %v558
        %v560 = vrot.slane %v348, %v559
        %v561 = vmul.f32 %v543, %v556
        %v562 = vmul.f32 %v543, %v560
        %v563 = vmul.f32 %v547, %v556
        %v564 = vmul.f32 %v547, %v560
        %v565 = vmul.f32 %v551, %v556
        %v566 = vmul.f32 %v551, %v560
        %v567 = vadd.f32 %v535, %v561
        %v568 = vadd.f32 %v536, %v562
        %v569 = vadd.f32 %v537, %v563
        %v570 = vadd.f32 %v538, %v564
        %v571 = vadd.f32 %v539, %v565
        %v572 = vadd.f32 %v540, %v566
        %573 = vset.pattern.permute.xlu0 7
        %574 = vperm.xlu0 %573, %v349
        %v575 = vpop.permute.xlu0 %574
        %577 = vset.pattern.permute.xlu0 7
        %578 = vperm.xlu0 %577, %v350
        %v579 = vpop.permute.xlu0 %578
        %581 = vset.pattern.permute.xlu0 7
        %582 = vperm.xlu0 %581, %v351
        %v583 = vpop.permute.xlu0 %582
        %v585 = vlaneseq
        %v586 = vshrl.u32 %v585, 7
        %v587 = vsub.s32 7, %v586
        %v588 = vrot.slane %v347, %v587
        %v589 = vlaneseq
        %v590 = vshrl.u32 %v589, 7
        %v591 = vsub.s32 7, %v590
        %v592 = vrot.slane %v348, %v591
        %v593 = vmul.f32 %v575, %v588
        %v594 = vmul.f32 %v575, %v592
        %v595 = vmul.f32 %v579, %v588
        %v596 = vmul.f32 %v579, %v592
        %v597 = vmul.f32 %v583, %v588
        %v598 = vmul.f32 %v583, %v592
        %v599 = vadd.f32 %v567, %v593
        %v600 = vadd.f32 %v568, %v594
        %v601 = vadd.f32 %v569, %v595
        %v602 = vadd.f32 %v570, %v596
        %v603 = vadd.f32 %v571, %v597
        %v604 = vadd.f32 %v572, %v598
        %v605 = vld [vmem:[%s338] sm:$0x3f]
        %v606 = vld [vmem:[%s338 + $0x8] sm:$0x3f]
        %v607 = vld [vmem:[%s5] sm:$0xff]
        %v608 = vld [vmem:[%s5 + $0x8] sm:$0xff]
        %v609 = vld [vmem:[%s5 + $0x10] sm:$0xff]
        %611 = vset.pattern.permute.xlu0 0
        %612 = vperm.xlu0 %611, %v607
        %v613 = vpop.permute.xlu0 %612
        %616 = vset.pattern.permute.xlu0 0
        %617 = vperm.xlu0 %616, %v608
        %v618 = vpop.permute.xlu0 %617
        %621 = vset.pattern.permute.xlu0 0
        %622 = vperm.xlu0 %621, %v609
        %v623 = vpop.permute.xlu0 %622
        %v625 = vlaneseq
        %v626 = vshrl.u32 %v625, 7
        %v627 = vsub.s32 0, %v626
        %v628 = vrot.slane %v605, %v627
        %v629 = vlaneseq
        %v630 = vshrl.u32 %v629, 7
        %v631 = vsub.s32 0, %v630
        %v632 = vrot.slane %v606, %v631
        %v633 = vmul.f32 %v613, %v628
        %v634 = vmul.f32 %v613, %v632
        %v635 = vmul.f32 %v618, %v628
        %v636 = vmul.f32 %v618, %v632
        %v637 = vmul.f32 %v623, %v628
        %v638 = vmul.f32 %v623, %v632
        %v639 = vadd.f32 %v599, %v633
        %v640 = vadd.f32 %v600, %v634
        %v641 = vadd.f32 %v601, %v635
        %v642 = vadd.f32 %v602, %v636
        %v643 = vadd.f32 %v603, %v637
        %v644 = vadd.f32 %v604, %v638
        %645 = vset.pattern.permute.xlu0 1
        %646 = vperm.xlu0 %645, %v607
        %v647 = vpop.permute.xlu0 %646
        %649 = vset.pattern.permute.xlu0 1
        %650 = vperm.xlu0 %649, %v608
        %v651 = vpop.permute.xlu0 %650
        %653 = vset.pattern.permute.xlu0 1
        %654 = vperm.xlu0 %653, %v609
        %v655 = vpop.permute.xlu0 %654
        %v657 = vlaneseq
        %v658 = vshrl.u32 %v657, 7
        %v659 = vsub.s32 1, %v658
        %v660 = vrot.slane %v605, %v659
        %v661 = vlaneseq
        %v662 = vshrl.u32 %v661, 7
        %v663 = vsub.s32 1, %v662
        %v664 = vrot.slane %v606, %v663
        %v665 = vmul.f32 %v647, %v660
        %v666 = vmul.f32 %v647, %v664
        %v667 = vmul.f32 %v651, %v660
        %v668 = vmul.f32 %v651, %v664
        %v669 = vmul.f32 %v655, %v660
        %v670 = vmul.f32 %v655, %v664
        %v671 = vadd.f32 %v639, %v665
        %v672 = vadd.f32 %v640, %v666
        %v673 = vadd.f32 %v641, %v667
        %v674 = vadd.f32 %v642, %v668
        %v675 = vadd.f32 %v643, %v669
        %v676 = vadd.f32 %v644, %v670
        %677 = vset.pattern.permute.xlu0 2
        %678 = vperm.xlu0 %677, %v607
        %v679 = vpop.permute.xlu0 %678
        %681 = vset.pattern.permute.xlu0 2
        %682 = vperm.xlu0 %681, %v608
        %v683 = vpop.permute.xlu0 %682
        %685 = vset.pattern.permute.xlu0 2
        %686 = vperm.xlu0 %685, %v609
        %v687 = vpop.permute.xlu0 %686
        %v689 = vlaneseq
        %v690 = vshrl.u32 %v689, 7
        %v691 = vsub.s32 2, %v690
        %v692 = vrot.slane %v605, %v691
        %v693 = vlaneseq
        %v694 = vshrl.u32 %v693, 7
        %v695 = vsub.s32 2, %v694
        %v696 = vrot.slane %v606, %v695
        %v697 = vmul.f32 %v679, %v692
        %v698 = vmul.f32 %v679, %v696
        %v699 = vmul.f32 %v683, %v692
        %v700 = vmul.f32 %v683, %v696
        %v701 = vmul.f32 %v687, %v692
        %v702 = vmul.f32 %v687, %v696
        %v703 = vadd.f32 %v671, %v697
        %v704 = vadd.f32 %v672, %v698
        %v705 = vadd.f32 %v673, %v699
        %v706 = vadd.f32 %v674, %v700
        %v707 = vadd.f32 %v675, %v701
        %v708 = vadd.f32 %v676, %v702
        %709 = vset.pattern.permute.xlu0 3
        %710 = vperm.xlu0 %709, %v607
        %v711 = vpop.permute.xlu0 %710
        %713 = vset.pattern.permute.xlu0 3
        %714 = vperm.xlu0 %713, %v608
        %v715 = vpop.permute.xlu0 %714
        %717 = vset.pattern.permute.xlu0 3
        %718 = vperm.xlu0 %717, %v609
        %v719 = vpop.permute.xlu0 %718
        %v721 = vlaneseq
        %v722 = vshrl.u32 %v721, 7
        %v723 = vsub.s32 3, %v722
        %v724 = vrot.slane %v605, %v723
        %v725 = vlaneseq
        %v726 = vshrl.u32 %v725, 7
        %v727 = vsub.s32 3, %v726
        %v728 = vrot.slane %v606, %v727
        %v729 = vmul.f32 %v711, %v724
        %v730 = vmul.f32 %v711, %v728
        %v731 = vmul.f32 %v715, %v724
        %v732 = vmul.f32 %v715, %v728
        %v733 = vmul.f32 %v719, %v724
        %v734 = vmul.f32 %v719, %v728
        %v735 = vadd.f32 %v703, %v729
        %v736 = vadd.f32 %v704, %v730
        %v737 = vadd.f32 %v705, %v731
        %v738 = vadd.f32 %v706, %v732
        %v739 = vadd.f32 %v707, %v733
        %v740 = vadd.f32 %v708, %v734
        %741 = vset.pattern.permute.xlu0 4
        %742 = vperm.xlu0 %741, %v607
        %v743 = vpop.permute.xlu0 %742
        %745 = vset.pattern.permute.xlu0 4
        %746 = vperm.xlu0 %745, %v608
        %v747 = vpop.permute.xlu0 %746
        %749 = vset.pattern.permute.xlu0 4
        %750 = vperm.xlu0 %749, %v609
        %v751 = vpop.permute.xlu0 %750
        %v753 = vlaneseq
        %v754 = vshrl.u32 %v753, 7
        %v755 = vsub.s32 4, %v754
        %v756 = vrot.slane %v605, %v755
        %v757 = vlaneseq
        %v758 = vshrl.u32 %v757, 7
        %v759 = vsub.s32 4, %v758
        %v760 = vrot.slane %v606, %v759
        %v761 = vmul.f32 %v743, %v756
        %v762 = vmul.f32 %v743, %v760
        %v763 = vmul.f32 %v747, %v756
        %v764 = vmul.f32 %v747, %v760
        %v765 = vmul.f32 %v751, %v756
        %v766 = vmul.f32 %v751, %v760
        %v767 = vadd.f32 %v735, %v761
        %v768 = vadd.f32 %v736, %v762
        %v769 = vadd.f32 %v737, %v763
        %v770 = vadd.f32 %v738, %v764
        %v771 = vadd.f32 %v739, %v765
        %v772 = vadd.f32 %v740, %v766
        %773 = vset.pattern.permute.xlu0 5
        %774 = vperm.xlu0 %773, %v607
        %v775 = vpop.permute.xlu0 %774
        %777 = vset.pattern.permute.xlu0 5
        %778 = vperm.xlu0 %777, %v608
        %v779 = vpop.permute.xlu0 %778
        %781 = vset.pattern.permute.xlu0 5
        %782 = vperm.xlu0 %781, %v609
        %v783 = vpop.permute.xlu0 %782
        %v785 = vlaneseq
        %v786 = vshrl.u32 %v785, 7
        %v787 = vsub.s32 5, %v786
        %v788 = vrot.slane %v605, %v787
        %v789 = vlaneseq
        %v790 = vshrl.u32 %v789, 7
        %v791 = vsub.s32 5, %v790
        %v792 = vrot.slane %v606, %v791
        %v793 = vmul.f32 %v775, %v788
        %v794 = vmul.f32 %v775, %v792
        %v795 = vmul.f32 %v779, %v788
        %v796 = vmul.f32 %v779, %v792
        %v797 = vmul.f32 %v783, %v788
        %v798 = vmul.f32 %v783, %v792
        %v799 = vadd.f32 %v767, %v793
        %v800 = vadd.f32 %v768, %v794
        %v801 = vadd.f32 %v769, %v795
        %v802 = vadd.f32 %v770, %v796
        %v803 = vadd.f32 %v771, %v797
        %v804 = vadd.f32 %v772, %v798
        %v805 = vld [vmem:[%s343] sm:$0xff]
        %v806 = vld [vmem:[%s6] sm:$0xff]
        %v807 = vld [vmem:[%s6 + $0x8] sm:$0xff]
        %v808 = vld [vmem:[%s6 + $0x10] sm:$0xff]
        %810 = vset.pattern.permute.xlu0 0
        %811 = vperm.xlu0 %810, %v806
        %v812 = vpop.permute.xlu0 %811
        %815 = vset.pattern.permute.xlu0 0
        %816 = vperm.xlu0 %815, %v807
        %v817 = vpop.permute.xlu0 %816
        %820 = vset.pattern.permute.xlu0 0
        %821 = vperm.xlu0 %820, %v808
        %v822 = vpop.permute.xlu0 %821
        %v825 = vlaneseq
        %v826 = vshrl.u32 %v825, 7
        %v827 = vsub.s32 0, %v826
        %v828 = vrot.slane %v805, %v827
        %v829 = vlaneseq
        %v830 = vshrl.u32 %v829, 7
        %v831 = vsub.s32 4, %v830
        %v832 = vrot.slane %v805, %v831
        %v835 = vlaneseq
        %v836 = vshrl.u32 %v835, 7
        %v837 = vsub.s32 0, %v836
        %v838 = vrot.slane %v828, %v837
        %v839 = vlaneseq
        %v840 = vshrl.u32 %v839, 7
        %v841 = vsub.s32 0, %v840
        %v842 = vrot.slane %v832, %v841
        %v843 = vmul.f32 %v812, %v838
        %v844 = vmul.f32 %v812, %v842
        %v845 = vmul.f32 %v817, %v838
        %v846 = vmul.f32 %v817, %v842
        %v847 = vmul.f32 %v822, %v838
        %v848 = vmul.f32 %v822, %v842
        %v849 = vadd.f32 %v799, %v843
        %v850 = vadd.f32 %v800, %v844
        %v851 = vadd.f32 %v801, %v845
        %v852 = vadd.f32 %v802, %v846
        %v853 = vadd.f32 %v803, %v847
        %v854 = vadd.f32 %v804, %v848
        %855 = vset.pattern.permute.xlu0 1
        %856 = vperm.xlu0 %855, %v806
        %v857 = vpop.permute.xlu0 %856
        %859 = vset.pattern.permute.xlu0 1
        %860 = vperm.xlu0 %859, %v807
        %v861 = vpop.permute.xlu0 %860
        %863 = vset.pattern.permute.xlu0 1
        %864 = vperm.xlu0 %863, %v808
        %v865 = vpop.permute.xlu0 %864
        %v867 = vlaneseq
        %v868 = vshrl.u32 %v867, 7
        %v869 = vsub.s32 1, %v868
        %v870 = vrot.slane %v805, %v869
        %v871 = vlaneseq
        %v872 = vshrl.u32 %v871, 7
        %v873 = vsub.s32 5, %v872
        %v874 = vrot.slane %v805, %v873
        %v877 = vlaneseq
        %v878 = vshrl.u32 %v877, 7
        %v879 = vsub.s32 1, %v878
        %v880 = vrot.slane %v870, %v879
        %v881 = vlaneseq
        %v882 = vshrl.u32 %v881, 7
        %v883 = vsub.s32 1, %v882
        %v884 = vrot.slane %v874, %v883
        %v885 = vmul.f32 %v857, %v880
        %v886 = vmul.f32 %v857, %v884
        %v887 = vmul.f32 %v861, %v880
        %v888 = vmul.f32 %v861, %v884
        %v889 = vmul.f32 %v865, %v880
        %v890 = vmul.f32 %v865, %v884
        %v891 = vadd.f32 %v849, %v885
        %v892 = vadd.f32 %v850, %v886
        %v893 = vadd.f32 %v851, %v887
        %v894 = vadd.f32 %v852, %v888
        %v895 = vadd.f32 %v853, %v889
        %v896 = vadd.f32 %v854, %v890
        %897 = vset.pattern.permute.xlu0 2
        %898 = vperm.xlu0 %897, %v806
        %v899 = vpop.permute.xlu0 %898
        %901 = vset.pattern.permute.xlu0 2
        %902 = vperm.xlu0 %901, %v807
        %v903 = vpop.permute.xlu0 %902
        %905 = vset.pattern.permute.xlu0 2
        %906 = vperm.xlu0 %905, %v808
        %v907 = vpop.permute.xlu0 %906
        %v909 = vlaneseq
        %v910 = vshrl.u32 %v909, 7
        %v911 = vsub.s32 2, %v910
        %v912 = vrot.slane %v805, %v911
        %v913 = vlaneseq
        %v914 = vshrl.u32 %v913, 7
        %v915 = vsub.s32 6, %v914
        %v916 = vrot.slane %v805, %v915
        %v919 = vlaneseq
        %v920 = vshrl.u32 %v919, 7
        %v921 = vsub.s32 2, %v920
        %v922 = vrot.slane %v912, %v921
        %v923 = vlaneseq
        %v924 = vshrl.u32 %v923, 7
        %v925 = vsub.s32 2, %v924
        %v926 = vrot.slane %v916, %v925
        %v927 = vmul.f32 %v899, %v922
        %v928 = vmul.f32 %v899, %v926
        %v929 = vmul.f32 %v903, %v922
        %v930 = vmul.f32 %v903, %v926
        %v931 = vmul.f32 %v907, %v922
        %v932 = vmul.f32 %v907, %v926
        %v933 = vadd.f32 %v891, %v927
        %v934 = vadd.f32 %v892, %v928
        %v935 = vadd.f32 %v893, %v929
        %v936 = vadd.f32 %v894, %v930
        %v937 = vadd.f32 %v895, %v931
        %v938 = vadd.f32 %v896, %v932
        %939 = vset.pattern.permute.xlu0 3
        %940 = vperm.xlu0 %939, %v806
        %v941 = vpop.permute.xlu0 %940
        %943 = vset.pattern.permute.xlu0 3
        %944 = vperm.xlu0 %943, %v807
        %v945 = vpop.permute.xlu0 %944
        %947 = vset.pattern.permute.xlu0 3
        %948 = vperm.xlu0 %947, %v808
        %v949 = vpop.permute.xlu0 %948
        %v951 = vlaneseq
        %v952 = vshrl.u32 %v951, 7
        %v953 = vsub.s32 3, %v952
        %v954 = vrot.slane %v805, %v953
        %v955 = vlaneseq
        %v956 = vshrl.u32 %v955, 7
        %v957 = vsub.s32 7, %v956
        %v958 = vrot.slane %v805, %v957
        %v961 = vlaneseq
        %v962 = vshrl.u32 %v961, 7
        %v963 = vsub.s32 3, %v962
        %v964 = vrot.slane %v954, %v963
        %v965 = vlaneseq
        %v966 = vshrl.u32 %v965, 7
        %v967 = vsub.s32 3, %v966
        %v968 = vrot.slane %v958, %v967
        %v969 = vmul.f32 %v941, %v964
        %v970 = vmul.f32 %v941, %v968
        %v971 = vmul.f32 %v945, %v964
        %v972 = vmul.f32 %v945, %v968
        %v973 = vmul.f32 %v949, %v964
        %v974 = vmul.f32 %v949, %v968
        %v975 = vadd.f32 %v933, %v969
        %v976 = vadd.f32 %v934, %v970
        %v977 = vadd.f32 %v935, %v971
        %v978 = vadd.f32 %v936, %v972
        %v979 = vadd.f32 %v937, %v973
        %v980 = vadd.f32 %v938, %v974
        %982 = vset.pattern.permute.xlu0 0
        %983 = vperm.xlu0 %982, %v344
        %v984 = vpop.permute.xlu0 %983
        %987 = vset.pattern.permute.xlu0 0
        %988 = vperm.xlu0 %987, %v345
        %v989 = vpop.permute.xlu0 %988
        %992 = vset.pattern.permute.xlu0 0
        %993 = vperm.xlu0 %992, %v346
        %v994 = vpop.permute.xlu0 %993
        %v996 = vmul.f32 %v975, %v984
        %v997 = vmul.f32 %v976, %v984
        %v998 = vmul.f32 %v977, %v989
        %v999 = vmul.f32 %v978, %v989
        %v1000 = vmul.f32 %v979, %v994
        %v1001 = vmul.f32 %v980, %v994
        %1002 = vset.pattern.permute.xlu0 1
        %1003 = vperm.xlu0 %1002, %v344
        %v1004 = vpop.permute.xlu0 %1003
        %1006 = vset.pattern.permute.xlu0 1
        %1007 = vperm.xlu0 %1006, %v345
        %v1008 = vpop.permute.xlu0 %1007
        %1010 = vset.pattern.permute.xlu0 1
        %1011 = vperm.xlu0 %1010, %v346
        %v1012 = vpop.permute.xlu0 %1011
        %v1014 = vadd.f32 %v996, %v1004
        %v1015 = vadd.f32 %v997, %v1004
        %v1016 = vadd.f32 %v998, %v1008
        %v1017 = vadd.f32 %v999, %v1008
        %v1018 = vadd.f32 %v1000, %v1012
        %v1019 = vadd.f32 %v1001, %v1012
        %v1020 = vmul.f32 %v1014, 0.5
        %v1021 = vmul.f32 %v1015, 0.5
        %v1022 = vmul.f32 %v1016, 0.5
        %v1023 = vmul.f32 %v1017, 0.5
        %v1024 = vmul.f32 %v1018, 0.5
        %v1025 = vmul.f32 %v1019, 0.5
        %v1026 = vtanh.pop %v1020
        %v1027 = vtanh.pop %v1021
        %v1028 = vtanh.pop %v1022
        %v1029 = vtanh.pop %v1023
        %v1030 = vtanh.pop %v1024
        %v1031 = vtanh.pop %v1025
        %v1032 = vmul.f32 %v1026, 0.5
        %v1033 = vmul.f32 %v1027, 0.5
        %v1034 = vmul.f32 %v1028, 0.5
        %v1035 = vmul.f32 %v1029, 0.5
        %v1036 = vmul.f32 %v1030, 0.5
        %v1037 = vmul.f32 %v1031, 0.5
        %v1038 = vadd.f32 %v1032, 0.5
        %v1039 = vadd.f32 %v1033, 0.5
        %v1040 = vadd.f32 %v1034, 0.5
        %v1041 = vadd.f32 %v1035, 0.5
        %v1042 = vadd.f32 %v1036, 0.5
        %v1043 = vadd.f32 %v1037, 0.5
        %v1044 = vmul.f32 %v1014, %v1038
        %v1045 = vmul.f32 %v1015, %v1039
        %v1046 = vmul.f32 %v1016, %v1040
        %v1047 = vmul.f32 %v1017, %v1041
        %v1048 = vmul.f32 %v1018, %v1042
        %v1049 = vmul.f32 %v1019, %v1043
        %v1050 = vld [vmem:[%s0] sm:$0x1f]
        %v1051 = vld [vmem:[%s0 + $0x8] sm:$0x1f]
        %v1052 = vld [vmem:[%s0 + $0x10] sm:$0x1f]
        %v1053 = vld [vmem:[%s0 + $0x18] sm:$0x1f]
        %v1054 = vlaneseq
        %v1055 = vshrl.u32 %v1054, 7
        %v1056 = vsub.s32 0, %v1055
        %v1057 = vrot.slane %v1050, %v1056
        %v1058 = vlaneseq
        %v1059 = vshrl.u32 %v1058, 7
        %v1060 = vsub.s32 0, %v1059
        %v1061 = vrot.slane %v1051, %v1060
        %v1062 = vlaneseq
        %v1063 = vshrl.u32 %v1062, 7
        %v1064 = vsub.s32 0, %v1063
        %v1065 = vrot.slane %v1052, %v1064
        %v1066 = vlaneseq
        %v1067 = vshrl.u32 %v1066, 7
        %v1068 = vsub.s32 0, %v1067
        %v1069 = vrot.slane %v1053, %v1068
        %v1070 = vmul.f32 %v1057, 0.0
        %v1071 = vmul.f32 %v1061, %v1044
        %v1072 = vmul.f32 %v1065, %v1045
        %v1073 = vmul.f32 %v1069, 0.0
        %v1074 = vmul.f32 %v1061, %v1046
        %v1075 = vmul.f32 %v1065, %v1047
        %v1076 = vmul.f32 %v1061, %v1048
        %v1077 = vmul.f32 %v1065, %v1049
        %1078 = vset.pattern.permute.xlu0 2
        %1079 = vperm.xlu0 %1078, %v344
        %v1080 = vpop.permute.xlu0 %1079
        %1082 = vset.pattern.permute.xlu0 2
        %1083 = vperm.xlu0 %1082, %v345
        %v1084 = vpop.permute.xlu0 %1083
        %1086 = vset.pattern.permute.xlu0 2
        %1087 = vperm.xlu0 %1086, %v346
        %v1088 = vpop.permute.xlu0 %1087
        %v1090 = vmul.f32 %v1080, %v1070
        %v1091 = vmul.f32 %v1080, %v1071
        %v1092 = vmul.f32 %v1080, %v1072
        %v1093 = vmul.f32 %v1084, %v1070
        %v1094 = vmul.f32 %v1084, %v1074
        %v1095 = vmul.f32 %v1084, %v1075
        %v1096 = vmul.f32 %v1088, %v1070
        %v1097 = vmul.f32 %v1088, %v1076
        %v1098 = vmul.f32 %v1088, %v1077
        %1099 = vset.pattern.permute.xlu0 7
        %1100 = vperm.xlu0 %1099, %v344
        %v1101 = vpop.permute.xlu0 %1100
        %1103 = vset.pattern.permute.xlu0 7
        %1104 = vperm.xlu0 %1103, %v345
        %v1105 = vpop.permute.xlu0 %1104
        %1107 = vset.pattern.permute.xlu0 7
        %1108 = vperm.xlu0 %1107, %v346
        %v1109 = vpop.permute.xlu0 %1108
        %v1111 = vmul.f32 %v1101, %v1070
        %v1112 = vmul.f32 %v1101, %v1071
        %v1113 = vmul.f32 %v1101, %v1072
        %v1114 = vmul.f32 %v1105, %v1070
        %v1115 = vmul.f32 %v1105, %v1074
        %v1116 = vmul.f32 %v1105, %v1075
        %v1117 = vmul.f32 %v1109, %v1070
        %v1118 = vmul.f32 %v1109, %v1076
        %v1119 = vmul.f32 %v1109, %v1077
        %1129 = vrot.lane.b32.xlu0 %v1111, 112
        %v1130 = vpop.permute.xlu0 %1129
        %1131 = vrot.lane.b32.xlu0 %v1112, 112
        %v1132 = vpop.permute.xlu0 %1131
        %1133 = vrot.lane.b32.xlu0 %v1113, 112
        %v1134 = vpop.permute.xlu0 %1133
        %1135 = vrot.lane.b32.xlu0 %v1114, 112
        %v1136 = vpop.permute.xlu0 %1135
        %1137 = vrot.lane.b32.xlu0 %v1115, 112
        %v1138 = vpop.permute.xlu0 %1137
        %1139 = vrot.lane.b32.xlu0 %v1116, 112
        %v1140 = vpop.permute.xlu0 %1139
        %1141 = vrot.lane.b32.xlu0 %v1117, 112
        %v1142 = vpop.permute.xlu0 %1141
        %1143 = vrot.lane.b32.xlu0 %v1118, 112
        %v1144 = vpop.permute.xlu0 %1143
        %1145 = vrot.lane.b32.xlu0 %v1119, 112
        %v1146 = vpop.permute.xlu0 %1145
        %vm1147 = vcmask 916480
        %v1148 = vsel %vm1147, %v1130, %v1132
        %v1149 = vsel %vm1147, %v1132, %v1134
        %v1150 = vsel %vm1147, %v1136, %v1138
        %v1151 = vsel %vm1147, %v1138, %v1140
        %v1152 = vsel %vm1147, %v1142, %v1144
        %v1153 = vsel %vm1147, %v1144, %v1146
        %v1163 = vadd.f32 %v1090, %v1148
        %v1164 = vadd.f32 %v1091, %v1149
        %v1165 = vadd.f32 %v1092, %v1134
        %v1166 = vadd.f32 %v1093, %v1150
        %v1167 = vadd.f32 %v1094, %v1151
        %v1168 = vadd.f32 %v1095, %v1140
        %v1169 = vadd.f32 %v1096, %v1152
        %v1170 = vadd.f32 %v1097, %v1153
        %v1171 = vadd.f32 %v1098, %v1146
        %1172 = vset.pattern.permute.xlu0 12
        %1173 = vperm.xlu0 %1172, %v344
        %v1174 = vpop.permute.xlu0 %1173
        %1176 = vset.pattern.permute.xlu0 12
        %1177 = vperm.xlu0 %1176, %v345
        %v1178 = vpop.permute.xlu0 %1177
        %1180 = vset.pattern.permute.xlu0 12
        %1181 = vperm.xlu0 %1180, %v346
        %v1182 = vpop.permute.xlu0 %1181
        %v1184 = vmul.f32 %v1174, %v1070
        %v1185 = vmul.f32 %v1174, %v1071
        %v1186 = vmul.f32 %v1174, %v1072
        %v1187 = vmul.f32 %v1178, %v1070
        %v1188 = vmul.f32 %v1178, %v1074
        %v1189 = vmul.f32 %v1178, %v1075
        %v1190 = vmul.f32 %v1182, %v1070
        %v1191 = vmul.f32 %v1182, %v1076
        %v1192 = vmul.f32 %v1182, %v1077
        %1202 = vrot.lane.b32.xlu0 %v1184, 96
        %v1203 = vpop.permute.xlu0 %1202
        %1204 = vrot.lane.b32.xlu0 %v1185, 96
        %v1205 = vpop.permute.xlu0 %1204
        %1206 = vrot.lane.b32.xlu0 %v1186, 96
        %v1207 = vpop.permute.xlu0 %1206
        %1208 = vrot.lane.b32.xlu0 %v1187, 96
        %v1209 = vpop.permute.xlu0 %1208
        %1210 = vrot.lane.b32.xlu0 %v1188, 96
        %v1211 = vpop.permute.xlu0 %1210
        %1212 = vrot.lane.b32.xlu0 %v1189, 96
        %v1213 = vpop.permute.xlu0 %1212
        %1214 = vrot.lane.b32.xlu0 %v1190, 96
        %v1215 = vpop.permute.xlu0 %1214
        %1216 = vrot.lane.b32.xlu0 %v1191, 96
        %v1217 = vpop.permute.xlu0 %1216
        %1218 = vrot.lane.b32.xlu0 %v1192, 96
        %v1219 = vpop.permute.xlu0 %1218
        %vm1220 = vcmask 785408
        %v1221 = vsel %vm1220, %v1203, %v1205
        %v1222 = vsel %vm1220, %v1205, %v1207
        %v1223 = vsel %vm1220, %v1209, %v1211
        %v1224 = vsel %vm1220, %v1211, %v1213
        %v1225 = vsel %vm1220, %v1215, %v1217
        %v1226 = vsel %vm1220, %v1217, %v1219
        %v1236 = vadd.f32 %v1163, %v1221
        %v1237 = vadd.f32 %v1164, %v1222
        %v1238 = vadd.f32 %v1165, %v1207
        %v1239 = vadd.f32 %v1166, %v1223
        %v1240 = vadd.f32 %v1167, %v1224
        %v1241 = vadd.f32 %v1168, %v1213
        %v1242 = vadd.f32 %v1169, %v1225
        %v1243 = vadd.f32 %v1170, %v1226
        %v1244 = vadd.f32 %v1171, %v1219
        %1245 = vset.pattern.permute.xlu0 17
        %1246 = vperm.xlu0 %1245, %v344
        %v1247 = vpop.permute.xlu0 %1246
        %1249 = vset.pattern.permute.xlu0 17
        %1250 = vperm.xlu0 %1249, %v345
        %v1251 = vpop.permute.xlu0 %1250
        %1253 = vset.pattern.permute.xlu0 17
        %1254 = vperm.xlu0 %1253, %v346
        %v1255 = vpop.permute.xlu0 %1254
        %v1257 = vmul.f32 %v1247, %v1071
        %v1258 = vmul.f32 %v1247, %v1072
        %v1259 = vmul.f32 %v1247, %v1073
        %v1260 = vmul.f32 %v1251, %v1074
        %v1261 = vmul.f32 %v1251, %v1075
        %v1262 = vmul.f32 %v1251, %v1073
        %v1263 = vmul.f32 %v1255, %v1076
        %v1264 = vmul.f32 %v1255, %v1077
        %v1265 = vmul.f32 %v1255, %v1073
        %1275 = vrot.lane.b32.xlu0 %v1257, 80
        %v1276 = vpop.permute.xlu0 %1275
        %1277 = vrot.lane.b32.xlu0 %v1258, 80
        %v1278 = vpop.permute.xlu0 %1277
        %1279 = vrot.lane.b32.xlu0 %v1259, 80
        %v1280 = vpop.permute.xlu0 %1279
        %1281 = vrot.lane.b32.xlu0 %v1260, 80
        %v1282 = vpop.permute.xlu0 %1281
        %1283 = vrot.lane.b32.xlu0 %v1261, 80
        %v1284 = vpop.permute.xlu0 %1283
        %1285 = vrot.lane.b32.xlu0 %v1262, 80
        %v1286 = vpop.permute.xlu0 %1285
        %1287 = vrot.lane.b32.xlu0 %v1263, 80
        %v1288 = vpop.permute.xlu0 %1287
        %1289 = vrot.lane.b32.xlu0 %v1264, 80
        %v1290 = vpop.permute.xlu0 %1289
        %1291 = vrot.lane.b32.xlu0 %v1265, 80
        %v1292 = vpop.permute.xlu0 %1291
        %vm1293 = vcmask 654336
        %v1294 = vsel %vm1293, %v1276, %v1278
        %v1295 = vsel %vm1293, %v1278, %v1280
        %v1296 = vsel %vm1293, %v1282, %v1284
        %v1297 = vsel %vm1293, %v1284, %v1286
        %v1298 = vsel %vm1293, %v1288, %v1290
        %v1299 = vsel %vm1293, %v1290, %v1292
        %v1309 = vadd.f32 %v1236, %v1276
        %v1310 = vadd.f32 %v1237, %v1294
        %v1311 = vadd.f32 %v1238, %v1295
        %v1312 = vadd.f32 %v1239, %v1282
        %v1313 = vadd.f32 %v1240, %v1296
        %v1314 = vadd.f32 %v1241, %v1297
        %v1315 = vadd.f32 %v1242, %v1288
        %v1316 = vadd.f32 %v1243, %v1298
        %v1317 = vadd.f32 %v1244, %v1299
        %1318 = vset.pattern.permute.xlu0 22
        %1319 = vperm.xlu0 %1318, %v344
        %v1320 = vpop.permute.xlu0 %1319
        %1322 = vset.pattern.permute.xlu0 22
        %1323 = vperm.xlu0 %1322, %v345
        %v1324 = vpop.permute.xlu0 %1323
        %1326 = vset.pattern.permute.xlu0 22
        %1327 = vperm.xlu0 %1326, %v346
        %v1328 = vpop.permute.xlu0 %1327
        %v1330 = vmul.f32 %v1320, %v1071
        %v1331 = vmul.f32 %v1320, %v1072
        %v1332 = vmul.f32 %v1320, %v1073
        %v1333 = vmul.f32 %v1324, %v1074
        %v1334 = vmul.f32 %v1324, %v1075
        %v1335 = vmul.f32 %v1324, %v1073
        %v1336 = vmul.f32 %v1328, %v1076
        %v1337 = vmul.f32 %v1328, %v1077
        %v1338 = vmul.f32 %v1328, %v1073
        %1348 = vrot.lane.b32.xlu0 %v1330, 64
        %v1349 = vpop.permute.xlu0 %1348
        %1350 = vrot.lane.b32.xlu0 %v1331, 64
        %v1351 = vpop.permute.xlu0 %1350
        %1352 = vrot.lane.b32.xlu0 %v1332, 64
        %v1353 = vpop.permute.xlu0 %1352
        %1354 = vrot.lane.b32.xlu0 %v1333, 64
        %v1355 = vpop.permute.xlu0 %1354
        %1356 = vrot.lane.b32.xlu0 %v1334, 64
        %v1357 = vpop.permute.xlu0 %1356
        %1358 = vrot.lane.b32.xlu0 %v1335, 64
        %v1359 = vpop.permute.xlu0 %1358
        %1360 = vrot.lane.b32.xlu0 %v1336, 64
        %v1361 = vpop.permute.xlu0 %1360
        %1362 = vrot.lane.b32.xlu0 %v1337, 64
        %v1363 = vpop.permute.xlu0 %1362
        %1364 = vrot.lane.b32.xlu0 %v1338, 64
        %v1365 = vpop.permute.xlu0 %1364
        %vm1366 = vcmask 523264
        %v1367 = vsel %vm1366, %v1349, %v1351
        %v1368 = vsel %vm1366, %v1351, %v1353
        %v1369 = vsel %vm1366, %v1355, %v1357
        %v1370 = vsel %vm1366, %v1357, %v1359
        %v1371 = vsel %vm1366, %v1361, %v1363
        %v1372 = vsel %vm1366, %v1363, %v1365
        %v1382 = vadd.f32 %v1309, %v1349
        %v1383 = vadd.f32 %v1310, %v1367
        %v1384 = vadd.f32 %v1311, %v1368
        %v1385 = vadd.f32 %v1312, %v1355
        %v1386 = vadd.f32 %v1313, %v1369
        %v1387 = vadd.f32 %v1314, %v1370
        %v1388 = vadd.f32 %v1315, %v1361
        %v1389 = vadd.f32 %v1316, %v1371
        %v1390 = vadd.f32 %v1317, %v1372
        %v1391 = vlaneseq
        %v1392 = vshrl.u32 %v1391, 7
        %v1393 = vsub.s32 1, %v1392
        %v1394 = vrot.slane %v1050, %v1393
        %v1395 = vlaneseq
        %v1396 = vshrl.u32 %v1395, 7
        %v1397 = vsub.s32 1, %v1396
        %v1398 = vrot.slane %v1051, %v1397
        %v1399 = vlaneseq
        %v1400 = vshrl.u32 %v1399, 7
        %v1401 = vsub.s32 1, %v1400
        %v1402 = vrot.slane %v1052, %v1401
        %v1403 = vlaneseq
        %v1404 = vshrl.u32 %v1403, 7
        %v1405 = vsub.s32 1, %v1404
        %v1406 = vrot.slane %v1053, %v1405
        %v1407 = vmul.f32 %v1394, 0.0
        %v1408 = vmul.f32 %v1398, %v1044
        %v1409 = vmul.f32 %v1402, %v1045
        %v1410 = vmul.f32 %v1406, 0.0
        %v1411 = vmul.f32 %v1398, %v1046
        %v1412 = vmul.f32 %v1402, %v1047
        %v1413 = vmul.f32 %v1398, %v1048
        %v1414 = vmul.f32 %v1402, %v1049
        %1415 = vset.pattern.permute.xlu0 3
        %1416 = vperm.xlu0 %1415, %v344
        %v1417 = vpop.permute.xlu0 %1416
        %1419 = vset.pattern.permute.xlu0 3
        %1420 = vperm.xlu0 %1419, %v345
        %v1421 = vpop.permute.xlu0 %1420
        %1423 = vset.pattern.permute.xlu0 3
        %1424 = vperm.xlu0 %1423, %v346
        %v1425 = vpop.permute.xlu0 %1424
        %v1427 = vmul.f32 %v1417, %v1407
        %v1428 = vmul.f32 %v1417, %v1408
        %v1429 = vmul.f32 %v1417, %v1409
        %v1430 = vmul.f32 %v1421, %v1407
        %v1431 = vmul.f32 %v1421, %v1411
        %v1432 = vmul.f32 %v1421, %v1412
        %v1433 = vmul.f32 %v1425, %v1407
        %v1434 = vmul.f32 %v1425, %v1413
        %v1435 = vmul.f32 %v1425, %v1414
        %1445 = vrot.lane.b32.xlu0 %v1427, 127
        %v1446 = vpop.permute.xlu0 %1445
        %1447 = vrot.lane.b32.xlu0 %v1428, 127
        %v1448 = vpop.permute.xlu0 %1447
        %1449 = vrot.lane.b32.xlu0 %v1429, 127
        %v1450 = vpop.permute.xlu0 %1449
        %1451 = vrot.lane.b32.xlu0 %v1430, 127
        %v1452 = vpop.permute.xlu0 %1451
        %1453 = vrot.lane.b32.xlu0 %v1431, 127
        %v1454 = vpop.permute.xlu0 %1453
        %1455 = vrot.lane.b32.xlu0 %v1432, 127
        %v1456 = vpop.permute.xlu0 %1455
        %1457 = vrot.lane.b32.xlu0 %v1433, 127
        %v1458 = vpop.permute.xlu0 %1457
        %1459 = vrot.lane.b32.xlu0 %v1434, 127
        %v1460 = vpop.permute.xlu0 %1459
        %1461 = vrot.lane.b32.xlu0 %v1435, 127
        %v1462 = vpop.permute.xlu0 %1461
        %vm1463 = vcmask 1039360
        %v1464 = vsel %vm1463, %v1446, %v1448
        %v1465 = vsel %vm1463, %v1448, %v1450
        %v1466 = vsel %vm1463, %v1452, %v1454
        %v1467 = vsel %vm1463, %v1454, %v1456
        %v1468 = vsel %vm1463, %v1458, %v1460
        %v1469 = vsel %vm1463, %v1460, %v1462
        %v1479 = vadd.f32 %v1382, %v1464
        %v1480 = vadd.f32 %v1383, %v1465
        %v1481 = vadd.f32 %v1384, %v1450
        %v1482 = vadd.f32 %v1385, %v1466
        %v1483 = vadd.f32 %v1386, %v1467
        %v1484 = vadd.f32 %v1387, %v1456
        %v1485 = vadd.f32 %v1388, %v1468
        %v1486 = vadd.f32 %v1389, %v1469
        %v1487 = vadd.f32 %v1390, %v1462
        %1488 = vset.pattern.permute.xlu0 8
        %1489 = vperm.xlu0 %1488, %v344
        %v1490 = vpop.permute.xlu0 %1489
        %1492 = vset.pattern.permute.xlu0 8
        %1493 = vperm.xlu0 %1492, %v345
        %v1494 = vpop.permute.xlu0 %1493
        %1496 = vset.pattern.permute.xlu0 8
        %1497 = vperm.xlu0 %1496, %v346
        %v1498 = vpop.permute.xlu0 %1497
        %v1500 = vmul.f32 %v1490, %v1407
        %v1501 = vmul.f32 %v1490, %v1408
        %v1502 = vmul.f32 %v1490, %v1409
        %v1503 = vmul.f32 %v1494, %v1407
        %v1504 = vmul.f32 %v1494, %v1411
        %v1505 = vmul.f32 %v1494, %v1412
        %v1506 = vmul.f32 %v1498, %v1407
        %v1507 = vmul.f32 %v1498, %v1413
        %v1508 = vmul.f32 %v1498, %v1414
        %1518 = vrot.lane.b32.xlu0 %v1500, 111
        %v1519 = vpop.permute.xlu0 %1518
        %1520 = vrot.lane.b32.xlu0 %v1501, 111
        %v1521 = vpop.permute.xlu0 %1520
        %1522 = vrot.lane.b32.xlu0 %v1502, 111
        %v1523 = vpop.permute.xlu0 %1522
        %1524 = vrot.lane.b32.xlu0 %v1503, 111
        %v1525 = vpop.permute.xlu0 %1524
        %1526 = vrot.lane.b32.xlu0 %v1504, 111
        %v1527 = vpop.permute.xlu0 %1526
        %1528 = vrot.lane.b32.xlu0 %v1505, 111
        %v1529 = vpop.permute.xlu0 %1528
        %1530 = vrot.lane.b32.xlu0 %v1506, 111
        %v1531 = vpop.permute.xlu0 %1530
        %1532 = vrot.lane.b32.xlu0 %v1507, 111
        %v1533 = vpop.permute.xlu0 %1532
        %1534 = vrot.lane.b32.xlu0 %v1508, 111
        %v1535 = vpop.permute.xlu0 %1534
        %vm1536 = vcmask 908288
        %v1537 = vsel %vm1536, %v1519, %v1521
        %v1538 = vsel %vm1536, %v1521, %v1523
        %v1539 = vsel %vm1536, %v1525, %v1527
        %v1540 = vsel %vm1536, %v1527, %v1529
        %v1541 = vsel %vm1536, %v1531, %v1533
        %v1542 = vsel %vm1536, %v1533, %v1535
        %v1552 = vadd.f32 %v1479, %v1537
        %v1553 = vadd.f32 %v1480, %v1538
        %v1554 = vadd.f32 %v1481, %v1523
        %v1555 = vadd.f32 %v1482, %v1539
        %v1556 = vadd.f32 %v1483, %v1540
        %v1557 = vadd.f32 %v1484, %v1529
        %v1558 = vadd.f32 %v1485, %v1541
        %v1559 = vadd.f32 %v1486, %v1542
        %v1560 = vadd.f32 %v1487, %v1535
        %1561 = vset.pattern.permute.xlu0 13
        %1562 = vperm.xlu0 %1561, %v344
        %v1563 = vpop.permute.xlu0 %1562
        %1565 = vset.pattern.permute.xlu0 13
        %1566 = vperm.xlu0 %1565, %v345
        %v1567 = vpop.permute.xlu0 %1566
        %1569 = vset.pattern.permute.xlu0 13
        %1570 = vperm.xlu0 %1569, %v346
        %v1571 = vpop.permute.xlu0 %1570
        %v1573 = vmul.f32 %v1563, %v1407
        %v1574 = vmul.f32 %v1563, %v1408
        %v1575 = vmul.f32 %v1563, %v1409
        %v1576 = vmul.f32 %v1567, %v1407
        %v1577 = vmul.f32 %v1567, %v1411
        %v1578 = vmul.f32 %v1567, %v1412
        %v1579 = vmul.f32 %v1571, %v1407
        %v1580 = vmul.f32 %v1571, %v1413
        %v1581 = vmul.f32 %v1571, %v1414
        %1591 = vrot.lane.b32.xlu0 %v1573, 95
        %v1592 = vpop.permute.xlu0 %1591
        %1593 = vrot.lane.b32.xlu0 %v1574, 95
        %v1594 = vpop.permute.xlu0 %1593
        %1595 = vrot.lane.b32.xlu0 %v1575, 95
        %v1596 = vpop.permute.xlu0 %1595
        %1597 = vrot.lane.b32.xlu0 %v1576, 95
        %v1598 = vpop.permute.xlu0 %1597
        %1599 = vrot.lane.b32.xlu0 %v1577, 95
        %v1600 = vpop.permute.xlu0 %1599
        %1601 = vrot.lane.b32.xlu0 %v1578, 95
        %v1602 = vpop.permute.xlu0 %1601
        %1603 = vrot.lane.b32.xlu0 %v1579, 95
        %v1604 = vpop.permute.xlu0 %1603
        %1605 = vrot.lane.b32.xlu0 %v1580, 95
        %v1606 = vpop.permute.xlu0 %1605
        %1607 = vrot.lane.b32.xlu0 %v1581, 95
        %v1608 = vpop.permute.xlu0 %1607
        %vm1609 = vcmask 777216
        %v1610 = vsel %vm1609, %v1592, %v1594
        %v1611 = vsel %vm1609, %v1594, %v1596
        %v1612 = vsel %vm1609, %v1598, %v1600
        %v1613 = vsel %vm1609, %v1600, %v1602
        %v1614 = vsel %vm1609, %v1604, %v1606
        %v1615 = vsel %vm1609, %v1606, %v1608
        %v1625 = vadd.f32 %v1552, %v1610
        %v1626 = vadd.f32 %v1553, %v1611
        %v1627 = vadd.f32 %v1554, %v1596
        %v1628 = vadd.f32 %v1555, %v1612
        %v1629 = vadd.f32 %v1556, %v1613
        %v1630 = vadd.f32 %v1557, %v1602
        %v1631 = vadd.f32 %v1558, %v1614
        %v1632 = vadd.f32 %v1559, %v1615
        %v1633 = vadd.f32 %v1560, %v1608
        %1634 = vset.pattern.permute.xlu0 18
        %1635 = vperm.xlu0 %1634, %v344
        %v1636 = vpop.permute.xlu0 %1635
        %1638 = vset.pattern.permute.xlu0 18
        %1639 = vperm.xlu0 %1638, %v345
        %v1640 = vpop.permute.xlu0 %1639
        %1642 = vset.pattern.permute.xlu0 18
        %1643 = vperm.xlu0 %1642, %v346
        %v1644 = vpop.permute.xlu0 %1643
        %v1646 = vmul.f32 %v1636, %v1408
        %v1647 = vmul.f32 %v1636, %v1409
        %v1648 = vmul.f32 %v1636, %v1410
        %v1649 = vmul.f32 %v1640, %v1411
        %v1650 = vmul.f32 %v1640, %v1412
        %v1651 = vmul.f32 %v1640, %v1410
        %v1652 = vmul.f32 %v1644, %v1413
        %v1653 = vmul.f32 %v1644, %v1414
        %v1654 = vmul.f32 %v1644, %v1410
        %1664 = vrot.lane.b32.xlu0 %v1646, 79
        %v1665 = vpop.permute.xlu0 %1664
        %1666 = vrot.lane.b32.xlu0 %v1647, 79
        %v1667 = vpop.permute.xlu0 %1666
        %1668 = vrot.lane.b32.xlu0 %v1648, 79
        %v1669 = vpop.permute.xlu0 %1668
        %1670 = vrot.lane.b32.xlu0 %v1649, 79
        %v1671 = vpop.permute.xlu0 %1670
        %1672 = vrot.lane.b32.xlu0 %v1650, 79
        %v1673 = vpop.permute.xlu0 %1672
        %1674 = vrot.lane.b32.xlu0 %v1651, 79
        %v1675 = vpop.permute.xlu0 %1674
        %1676 = vrot.lane.b32.xlu0 %v1652, 79
        %v1677 = vpop.permute.xlu0 %1676
        %1678 = vrot.lane.b32.xlu0 %v1653, 79
        %v1679 = vpop.permute.xlu0 %1678
        %1680 = vrot.lane.b32.xlu0 %v1654, 79
        %v1681 = vpop.permute.xlu0 %1680
        %vm1682 = vcmask 646144
        %v1683 = vsel %vm1682, %v1665, %v1667
        %v1684 = vsel %vm1682, %v1667, %v1669
        %v1685 = vsel %vm1682, %v1671, %v1673
        %v1686 = vsel %vm1682, %v1673, %v1675
        %v1687 = vsel %vm1682, %v1677, %v1679
        %v1688 = vsel %vm1682, %v1679, %v1681
        %v1698 = vadd.f32 %v1625, %v1665
        %v1699 = vadd.f32 %v1626, %v1683
        %v1700 = vadd.f32 %v1627, %v1684
        %v1701 = vadd.f32 %v1628, %v1671
        %v1702 = vadd.f32 %v1629, %v1685
        %v1703 = vadd.f32 %v1630, %v1686
        %v1704 = vadd.f32 %v1631, %v1677
        %v1705 = vadd.f32 %v1632, %v1687
        %v1706 = vadd.f32 %v1633, %v1688
        %1707 = vset.pattern.permute.xlu0 23
        %1708 = vperm.xlu0 %1707, %v344
        %v1709 = vpop.permute.xlu0 %1708
        %1711 = vset.pattern.permute.xlu0 23
        %1712 = vperm.xlu0 %1711, %v345
        %v1713 = vpop.permute.xlu0 %1712
        %1715 = vset.pattern.permute.xlu0 23
        %1716 = vperm.xlu0 %1715, %v346
        %v1717 = vpop.permute.xlu0 %1716
        %v1719 = vmul.f32 %v1709, %v1408
        %v1720 = vmul.f32 %v1709, %v1409
        %v1721 = vmul.f32 %v1709, %v1410
        %v1722 = vmul.f32 %v1713, %v1411
        %v1723 = vmul.f32 %v1713, %v1412
        %v1724 = vmul.f32 %v1713, %v1410
        %v1725 = vmul.f32 %v1717, %v1413
        %v1726 = vmul.f32 %v1717, %v1414
        %v1727 = vmul.f32 %v1717, %v1410
        %1737 = vrot.lane.b32.xlu0 %v1719, 63
        %v1738 = vpop.permute.xlu0 %1737
        %1739 = vrot.lane.b32.xlu0 %v1720, 63
        %v1740 = vpop.permute.xlu0 %1739
        %1741 = vrot.lane.b32.xlu0 %v1721, 63
        %v1742 = vpop.permute.xlu0 %1741
        %1743 = vrot.lane.b32.xlu0 %v1722, 63
        %v1744 = vpop.permute.xlu0 %1743
        %1745 = vrot.lane.b32.xlu0 %v1723, 63
        %v1746 = vpop.permute.xlu0 %1745
        %1747 = vrot.lane.b32.xlu0 %v1724, 63
        %v1748 = vpop.permute.xlu0 %1747
        %1749 = vrot.lane.b32.xlu0 %v1725, 63
        %v1750 = vpop.permute.xlu0 %1749
        %1751 = vrot.lane.b32.xlu0 %v1726, 63
        %v1752 = vpop.permute.xlu0 %1751
        %1753 = vrot.lane.b32.xlu0 %v1727, 63
        %v1754 = vpop.permute.xlu0 %1753
        %vm1755 = vcmask 515072
        %v1756 = vsel %vm1755, %v1738, %v1740
        %v1757 = vsel %vm1755, %v1740, %v1742
        %v1758 = vsel %vm1755, %v1744, %v1746
        %v1759 = vsel %vm1755, %v1746, %v1748
        %v1760 = vsel %vm1755, %v1750, %v1752
        %v1761 = vsel %vm1755, %v1752, %v1754
        %v1771 = vadd.f32 %v1698, %v1738
        %v1772 = vadd.f32 %v1699, %v1756
        %v1773 = vadd.f32 %v1700, %v1757
        %v1774 = vadd.f32 %v1701, %v1744
        %v1775 = vadd.f32 %v1702, %v1758
        %v1776 = vadd.f32 %v1703, %v1759
        %v1777 = vadd.f32 %v1704, %v1750
        %v1778 = vadd.f32 %v1705, %v1760
        %v1779 = vadd.f32 %v1706, %v1761
        %1780 = vset.pattern.permute.xlu0 4
        %1781 = vperm.xlu0 %1780, %v344
        %v1782 = vpop.permute.xlu0 %1781
        %1784 = vset.pattern.permute.xlu0 4
        %1785 = vperm.xlu0 %1784, %v345
        %v1786 = vpop.permute.xlu0 %1785
        %1788 = vset.pattern.permute.xlu0 4
        %1789 = vperm.xlu0 %1788, %v346
        %v1790 = vpop.permute.xlu0 %1789
        %v1792 = vmul.f32 %v1782, 0.0
        %v1793 = vmul.f32 %v1782, %v1044
        %v1794 = vmul.f32 %v1782, %v1045
        %v1795 = vmul.f32 %v1786, 0.0
        %v1796 = vmul.f32 %v1786, %v1046
        %v1797 = vmul.f32 %v1786, %v1047
        %v1798 = vmul.f32 %v1790, 0.0
        %v1799 = vmul.f32 %v1790, %v1048
        %v1800 = vmul.f32 %v1790, %v1049
        %1810 = vrot.lane.b32.xlu0 %v1792, 126
        %v1811 = vpop.permute.xlu0 %1810
        %1812 = vrot.lane.b32.xlu0 %v1793, 126
        %v1813 = vpop.permute.xlu0 %1812
        %1814 = vrot.lane.b32.xlu0 %v1794, 126
        %v1815 = vpop.permute.xlu0 %1814
        %1816 = vrot.lane.b32.xlu0 %v1795, 126
        %v1817 = vpop.permute.xlu0 %1816
        %1818 = vrot.lane.b32.xlu0 %v1796, 126
        %v1819 = vpop.permute.xlu0 %1818
        %1820 = vrot.lane.b32.xlu0 %v1797, 126
        %v1821 = vpop.permute.xlu0 %1820
        %1822 = vrot.lane.b32.xlu0 %v1798, 126
        %v1823 = vpop.permute.xlu0 %1822
        %1824 = vrot.lane.b32.xlu0 %v1799, 126
        %v1825 = vpop.permute.xlu0 %1824
        %1826 = vrot.lane.b32.xlu0 %v1800, 126
        %v1827 = vpop.permute.xlu0 %1826
        %vm1828 = vcmask 1031168
        %v1829 = vsel %vm1828, %v1811, %v1813
        %v1830 = vsel %vm1828, %v1813, %v1815
        %v1831 = vsel %vm1828, %v1817, %v1819
        %v1832 = vsel %vm1828, %v1819, %v1821
        %v1833 = vsel %vm1828, %v1823, %v1825
        %v1834 = vsel %vm1828, %v1825, %v1827
        %v1844 = vadd.f32 %v1771, %v1829
        %v1845 = vadd.f32 %v1772, %v1830
        %v1846 = vadd.f32 %v1773, %v1815
        %v1847 = vadd.f32 %v1774, %v1831
        %v1848 = vadd.f32 %v1775, %v1832
        %v1849 = vadd.f32 %v1776, %v1821
        %v1850 = vadd.f32 %v1777, %v1833
        %v1851 = vadd.f32 %v1778, %v1834
        %v1852 = vadd.f32 %v1779, %v1827
        %1853 = vset.pattern.permute.xlu0 9
        %1854 = vperm.xlu0 %1853, %v344
        %v1855 = vpop.permute.xlu0 %1854
        %1857 = vset.pattern.permute.xlu0 9
        %1858 = vperm.xlu0 %1857, %v345
        %v1859 = vpop.permute.xlu0 %1858
        %1861 = vset.pattern.permute.xlu0 9
        %1862 = vperm.xlu0 %1861, %v346
        %v1863 = vpop.permute.xlu0 %1862
        %v1865 = vmul.f32 %v1855, 0.0
        %v1866 = vmul.f32 %v1855, %v1044
        %v1867 = vmul.f32 %v1855, %v1045
        %v1868 = vmul.f32 %v1859, 0.0
        %v1869 = vmul.f32 %v1859, %v1046
        %v1870 = vmul.f32 %v1859, %v1047
        %v1871 = vmul.f32 %v1863, 0.0
        %v1872 = vmul.f32 %v1863, %v1048
        %v1873 = vmul.f32 %v1863, %v1049
        %1883 = vrot.lane.b32.xlu0 %v1865, 110
        %v1884 = vpop.permute.xlu0 %1883
        %1885 = vrot.lane.b32.xlu0 %v1866, 110
        %v1886 = vpop.permute.xlu0 %1885
        %1887 = vrot.lane.b32.xlu0 %v1867, 110
        %v1888 = vpop.permute.xlu0 %1887
        %1889 = vrot.lane.b32.xlu0 %v1868, 110
        %v1890 = vpop.permute.xlu0 %1889
        %1891 = vrot.lane.b32.xlu0 %v1869, 110
        %v1892 = vpop.permute.xlu0 %1891
        %1893 = vrot.lane.b32.xlu0 %v1870, 110
        %v1894 = vpop.permute.xlu0 %1893
        %1895 = vrot.lane.b32.xlu0 %v1871, 110
        %v1896 = vpop.permute.xlu0 %1895
        %1897 = vrot.lane.b32.xlu0 %v1872, 110
        %v1898 = vpop.permute.xlu0 %1897
        %1899 = vrot.lane.b32.xlu0 %v1873, 110
        %v1900 = vpop.permute.xlu0 %1899
        %vm1901 = vcmask 900096
        %v1902 = vsel %vm1901, %v1884, %v1886
        %v1903 = vsel %vm1901, %v1886, %v1888
        %v1904 = vsel %vm1901, %v1890, %v1892
        %v1905 = vsel %vm1901, %v1892, %v1894
        %v1906 = vsel %vm1901, %v1896, %v1898
        %v1907 = vsel %vm1901, %v1898, %v1900
        %v1917 = vadd.f32 %v1844, %v1902
        %v1918 = vadd.f32 %v1845, %v1903
        %v1919 = vadd.f32 %v1846, %v1888
        %v1920 = vadd.f32 %v1847, %v1904
        %v1921 = vadd.f32 %v1848, %v1905
        %v1922 = vadd.f32 %v1849, %v1894
        %v1923 = vadd.f32 %v1850, %v1906
        %v1924 = vadd.f32 %v1851, %v1907
        %v1925 = vadd.f32 %v1852, %v1900
        %1926 = vset.pattern.permute.xlu0 14
        %1927 = vperm.xlu0 %1926, %v344
        %v1928 = vpop.permute.xlu0 %1927
        %1930 = vset.pattern.permute.xlu0 14
        %1931 = vperm.xlu0 %1930, %v345
        %v1932 = vpop.permute.xlu0 %1931
        %1934 = vset.pattern.permute.xlu0 14
        %1935 = vperm.xlu0 %1934, %v346
        %v1936 = vpop.permute.xlu0 %1935
        %v1938 = vmul.f32 %v1928, %v1044
        %v1939 = vmul.f32 %v1928, %v1045
        %v1940 = vmul.f32 %v1932, %v1046
        %v1941 = vmul.f32 %v1932, %v1047
        %v1942 = vmul.f32 %v1936, %v1048
        %v1943 = vmul.f32 %v1936, %v1049
        %1950 = vrot.lane.b32.xlu0 %v1938, 94
        %v1951 = vpop.permute.xlu0 %1950
        %1952 = vrot.lane.b32.xlu0 %v1939, 94
        %v1953 = vpop.permute.xlu0 %1952
        %1954 = vrot.lane.b32.xlu0 %v1940, 94
        %v1955 = vpop.permute.xlu0 %1954
        %1956 = vrot.lane.b32.xlu0 %v1941, 94
        %v1957 = vpop.permute.xlu0 %1956
        %1958 = vrot.lane.b32.xlu0 %v1942, 94
        %v1959 = vpop.permute.xlu0 %1958
        %1960 = vrot.lane.b32.xlu0 %v1943, 94
        %v1961 = vpop.permute.xlu0 %1960
        %vm1962 = vcmask 769024
        %v1963 = vsel %vm1962, %v1951, %v1953
        %v1964 = vsel %vm1962, %v1955, %v1957
        %v1965 = vsel %vm1962, %v1959, %v1961
        %v1975 = vadd.f32 %v1917, %v1951
        %v1976 = vadd.f32 %v1918, %v1963
        %v1977 = vadd.f32 %v1919, %v1953
        %v1978 = vadd.f32 %v1920, %v1955
        %v1979 = vadd.f32 %v1921, %v1964
        %v1980 = vadd.f32 %v1922, %v1957
        %v1981 = vadd.f32 %v1923, %v1959
        %v1982 = vadd.f32 %v1924, %v1965
        %v1983 = vadd.f32 %v1925, %v1961
        %1984 = vset.pattern.permute.xlu0 19
        %1985 = vperm.xlu0 %1984, %v344
        %v1986 = vpop.permute.xlu0 %1985
        %1988 = vset.pattern.permute.xlu0 19
        %1989 = vperm.xlu0 %1988, %v345
        %v1990 = vpop.permute.xlu0 %1989
        %1992 = vset.pattern.permute.xlu0 19
        %1993 = vperm.xlu0 %1992, %v346
        %v1994 = vpop.permute.xlu0 %1993
        %v1996 = vmul.f32 %v1986, %v1044
        %v1997 = vmul.f32 %v1986, %v1045
        %v1998 = vmul.f32 %v1986, 0.0
        %v1999 = vmul.f32 %v1990, %v1046
        %v2000 = vmul.f32 %v1990, %v1047
        %v2001 = vmul.f32 %v1990, 0.0
        %v2002 = vmul.f32 %v1994, %v1048
        %v2003 = vmul.f32 %v1994, %v1049
        %v2004 = vmul.f32 %v1994, 0.0
        %2014 = vrot.lane.b32.xlu0 %v1996, 78
        %v2015 = vpop.permute.xlu0 %2014
        %2016 = vrot.lane.b32.xlu0 %v1997, 78
        %v2017 = vpop.permute.xlu0 %2016
        %2018 = vrot.lane.b32.xlu0 %v1998, 78
        %v2019 = vpop.permute.xlu0 %2018
        %2020 = vrot.lane.b32.xlu0 %v1999, 78
        %v2021 = vpop.permute.xlu0 %2020
        %2022 = vrot.lane.b32.xlu0 %v2000, 78
        %v2023 = vpop.permute.xlu0 %2022
        %2024 = vrot.lane.b32.xlu0 %v2001, 78
        %v2025 = vpop.permute.xlu0 %2024
        %2026 = vrot.lane.b32.xlu0 %v2002, 78
        %v2027 = vpop.permute.xlu0 %2026
        %2028 = vrot.lane.b32.xlu0 %v2003, 78
        %v2029 = vpop.permute.xlu0 %2028
        %2030 = vrot.lane.b32.xlu0 %v2004, 78
        %v2031 = vpop.permute.xlu0 %2030
        %vm2032 = vcmask 637952
        %v2033 = vsel %vm2032, %v2015, %v2017
        %v2034 = vsel %vm2032, %v2017, %v2019
        %v2035 = vsel %vm2032, %v2021, %v2023
        %v2036 = vsel %vm2032, %v2023, %v2025
        %v2037 = vsel %vm2032, %v2027, %v2029
        %v2038 = vsel %vm2032, %v2029, %v2031
        %v2048 = vadd.f32 %v1975, %v2015
        %v2049 = vadd.f32 %v1976, %v2033
        %v2050 = vadd.f32 %v1977, %v2034
        %v2051 = vadd.f32 %v1978, %v2021
        %v2052 = vadd.f32 %v1979, %v2035
        %v2053 = vadd.f32 %v1980, %v2036
        %v2054 = vadd.f32 %v1981, %v2027
        %v2055 = vadd.f32 %v1982, %v2037
        %v2056 = vadd.f32 %v1983, %v2038
        %2057 = vset.pattern.permute.xlu0 24
        %2058 = vperm.xlu0 %2057, %v344
        %v2059 = vpop.permute.xlu0 %2058
        %2061 = vset.pattern.permute.xlu0 24
        %2062 = vperm.xlu0 %2061, %v345
        %v2063 = vpop.permute.xlu0 %2062
        %2065 = vset.pattern.permute.xlu0 24
        %2066 = vperm.xlu0 %2065, %v346
        %v2067 = vpop.permute.xlu0 %2066
        %v2069 = vmul.f32 %v2059, %v1044
        %v2070 = vmul.f32 %v2059, %v1045
        %v2071 = vmul.f32 %v2059, 0.0
        %v2072 = vmul.f32 %v2063, %v1046
        %v2073 = vmul.f32 %v2063, %v1047
        %v2074 = vmul.f32 %v2063, 0.0
        %v2075 = vmul.f32 %v2067, %v1048
        %v2076 = vmul.f32 %v2067, %v1049
        %v2077 = vmul.f32 %v2067, 0.0
        %2087 = vrot.lane.b32.xlu0 %v2069, 62
        %v2088 = vpop.permute.xlu0 %2087
        %2089 = vrot.lane.b32.xlu0 %v2070, 62
        %v2090 = vpop.permute.xlu0 %2089
        %2091 = vrot.lane.b32.xlu0 %v2071, 62
        %v2092 = vpop.permute.xlu0 %2091
        %2093 = vrot.lane.b32.xlu0 %v2072, 62
        %v2094 = vpop.permute.xlu0 %2093
        %2095 = vrot.lane.b32.xlu0 %v2073, 62
        %v2096 = vpop.permute.xlu0 %2095
        %2097 = vrot.lane.b32.xlu0 %v2074, 62
        %v2098 = vpop.permute.xlu0 %2097
        %2099 = vrot.lane.b32.xlu0 %v2075, 62
        %v2100 = vpop.permute.xlu0 %2099
        %2101 = vrot.lane.b32.xlu0 %v2076, 62
        %v2102 = vpop.permute.xlu0 %2101
        %2103 = vrot.lane.b32.xlu0 %v2077, 62
        %v2104 = vpop.permute.xlu0 %2103
        %vm2105 = vcmask 506880
        %v2106 = vsel %vm2105, %v2088, %v2090
        %v2107 = vsel %vm2105, %v2090, %v2092
        %v2108 = vsel %vm2105, %v2094, %v2096
        %v2109 = vsel %vm2105, %v2096, %v2098
        %v2110 = vsel %vm2105, %v2100, %v2102
        %v2111 = vsel %vm2105, %v2102, %v2104
        %v2121 = vadd.f32 %v2048, %v2088
        %v2122 = vadd.f32 %v2049, %v2106
        %v2123 = vadd.f32 %v2050, %v2107
        %v2124 = vadd.f32 %v2051, %v2094
        %v2125 = vadd.f32 %v2052, %v2108
        %v2126 = vadd.f32 %v2053, %v2109
        %v2127 = vadd.f32 %v2054, %v2100
        %v2128 = vadd.f32 %v2055, %v2110
        %v2129 = vadd.f32 %v2056, %v2111
        %v2130 = vlaneseq
        %v2131 = vshrl.u32 %v2130, 7
        %v2132 = vsub.s32 3, %v2131
        %v2133 = vrot.slane %v1050, %v2132
        %v2134 = vlaneseq
        %v2135 = vshrl.u32 %v2134, 7
        %v2136 = vsub.s32 3, %v2135
        %v2137 = vrot.slane %v1051, %v2136
        %v2138 = vlaneseq
        %v2139 = vshrl.u32 %v2138, 7
        %v2140 = vsub.s32 3, %v2139
        %v2141 = vrot.slane %v1052, %v2140
        %v2142 = vlaneseq
        %v2143 = vshrl.u32 %v2142, 7
        %v2144 = vsub.s32 3, %v2143
        %v2145 = vrot.slane %v1053, %v2144
        %v2146 = vmul.f32 %v2133, 0.0
        %v2147 = vmul.f32 %v2137, %v1044
        %v2148 = vmul.f32 %v2141, %v1045
        %v2149 = vmul.f32 %v2145, 0.0
        %v2150 = vmul.f32 %v2137, %v1046
        %v2151 = vmul.f32 %v2141, %v1047
        %v2152 = vmul.f32 %v2137, %v1048
        %v2153 = vmul.f32 %v2141, %v1049
        %2154 = vset.pattern.permute.xlu0 5
        %2155 = vperm.xlu0 %2154, %v344
        %v2156 = vpop.permute.xlu0 %2155
        %2158 = vset.pattern.permute.xlu0 5
        %2159 = vperm.xlu0 %2158, %v345
        %v2160 = vpop.permute.xlu0 %2159
        %2162 = vset.pattern.permute.xlu0 5
        %2163 = vperm.xlu0 %2162, %v346
        %v2164 = vpop.permute.xlu0 %2163
        %v2166 = vmul.f32 %v2156, %v2146
        %v2167 = vmul.f32 %v2156, %v2147
        %v2168 = vmul.f32 %v2156, %v2148
        %v2169 = vmul.f32 %v2160, %v2146
        %v2170 = vmul.f32 %v2160, %v2150
        %v2171 = vmul.f32 %v2160, %v2151
        %v2172 = vmul.f32 %v2164, %v2146
        %v2173 = vmul.f32 %v2164, %v2152
        %v2174 = vmul.f32 %v2164, %v2153
        %2184 = vrot.lane.b32.xlu0 %v2166, 125
        %v2185 = vpop.permute.xlu0 %2184
        %2186 = vrot.lane.b32.xlu0 %v2167, 125
        %v2187 = vpop.permute.xlu0 %2186
        %2188 = vrot.lane.b32.xlu0 %v2168, 125
        %v2189 = vpop.permute.xlu0 %2188
        %2190 = vrot.lane.b32.xlu0 %v2169, 125
        %v2191 = vpop.permute.xlu0 %2190
        %2192 = vrot.lane.b32.xlu0 %v2170, 125
        %v2193 = vpop.permute.xlu0 %2192
        %2194 = vrot.lane.b32.xlu0 %v2171, 125
        %v2195 = vpop.permute.xlu0 %2194
        %2196 = vrot.lane.b32.xlu0 %v2172, 125
        %v2197 = vpop.permute.xlu0 %2196
        %2198 = vrot.lane.b32.xlu0 %v2173, 125
        %v2199 = vpop.permute.xlu0 %2198
        %2200 = vrot.lane.b32.xlu0 %v2174, 125
        %v2201 = vpop.permute.xlu0 %2200
        %vm2202 = vcmask 1022976
        %v2203 = vsel %vm2202, %v2185, %v2187
        %v2204 = vsel %vm2202, %v2187, %v2189
        %v2205 = vsel %vm2202, %v2191, %v2193
        %v2206 = vsel %vm2202, %v2193, %v2195
        %v2207 = vsel %vm2202, %v2197, %v2199
        %v2208 = vsel %vm2202, %v2199, %v2201
        %v2218 = vadd.f32 %v2121, %v2203
        %v2219 = vadd.f32 %v2122, %v2204
        %v2220 = vadd.f32 %v2123, %v2189
        %v2221 = vadd.f32 %v2124, %v2205
        %v2222 = vadd.f32 %v2125, %v2206
        %v2223 = vadd.f32 %v2126, %v2195
        %v2224 = vadd.f32 %v2127, %v2207
        %v2225 = vadd.f32 %v2128, %v2208
        %v2226 = vadd.f32 %v2129, %v2201
        %2227 = vset.pattern.permute.xlu0 10
        %2228 = vperm.xlu0 %2227, %v344
        %v2229 = vpop.permute.xlu0 %2228
        %2231 = vset.pattern.permute.xlu0 10
        %2232 = vperm.xlu0 %2231, %v345
        %v2233 = vpop.permute.xlu0 %2232
        %2235 = vset.pattern.permute.xlu0 10
        %2236 = vperm.xlu0 %2235, %v346
        %v2237 = vpop.permute.xlu0 %2236
        %v2239 = vmul.f32 %v2229, %v2146
        %v2240 = vmul.f32 %v2229, %v2147
        %v2241 = vmul.f32 %v2229, %v2148
        %v2242 = vmul.f32 %v2233, %v2146
        %v2243 = vmul.f32 %v2233, %v2150
        %v2244 = vmul.f32 %v2233, %v2151
        %v2245 = vmul.f32 %v2237, %v2146
        %v2246 = vmul.f32 %v2237, %v2152
        %v2247 = vmul.f32 %v2237, %v2153
        %2257 = vrot.lane.b32.xlu0 %v2239, 109
        %v2258 = vpop.permute.xlu0 %2257
        %2259 = vrot.lane.b32.xlu0 %v2240, 109
        %v2260 = vpop.permute.xlu0 %2259
        %2261 = vrot.lane.b32.xlu0 %v2241, 109
        %v2262 = vpop.permute.xlu0 %2261
        %2263 = vrot.lane.b32.xlu0 %v2242, 109
        %v2264 = vpop.permute.xlu0 %2263
        %2265 = vrot.lane.b32.xlu0 %v2243, 109
        %v2266 = vpop.permute.xlu0 %2265
        %2267 = vrot.lane.b32.xlu0 %v2244, 109
        %v2268 = vpop.permute.xlu0 %2267
        %2269 = vrot.lane.b32.xlu0 %v2245, 109
        %v2270 = vpop.permute.xlu0 %2269
        %2271 = vrot.lane.b32.xlu0 %v2246, 109
        %v2272 = vpop.permute.xlu0 %2271
        %2273 = vrot.lane.b32.xlu0 %v2247, 109
        %v2274 = vpop.permute.xlu0 %2273
        %vm2275 = vcmask 891904
        %v2276 = vsel %vm2275, %v2258, %v2260
        %v2277 = vsel %vm2275, %v2260, %v2262
        %v2278 = vsel %vm2275, %v2264, %v2266
        %v2279 = vsel %vm2275, %v2266, %v2268
        %v2280 = vsel %vm2275, %v2270, %v2272
        %v2281 = vsel %vm2275, %v2272, %v2274
        %v2291 = vadd.f32 %v2218, %v2276
        %v2292 = vadd.f32 %v2219, %v2277
        %v2293 = vadd.f32 %v2220, %v2262
        %v2294 = vadd.f32 %v2221, %v2278
        %v2295 = vadd.f32 %v2222, %v2279
        %v2296 = vadd.f32 %v2223, %v2268
        %v2297 = vadd.f32 %v2224, %v2280
        %v2298 = vadd.f32 %v2225, %v2281
        %v2299 = vadd.f32 %v2226, %v2274
        %2300 = vset.pattern.permute.xlu0 15
        %2301 = vperm.xlu0 %2300, %v344
        %v2302 = vpop.permute.xlu0 %2301
        %2304 = vset.pattern.permute.xlu0 15
        %2305 = vperm.xlu0 %2304, %v345
        %v2306 = vpop.permute.xlu0 %2305
        %2308 = vset.pattern.permute.xlu0 15
        %2309 = vperm.xlu0 %2308, %v346
        %v2310 = vpop.permute.xlu0 %2309
        %v2312 = vmul.f32 %v2302, %v2147
        %v2313 = vmul.f32 %v2302, %v2148
        %v2314 = vmul.f32 %v2302, %v2149
        %v2315 = vmul.f32 %v2306, %v2150
        %v2316 = vmul.f32 %v2306, %v2151
        %v2317 = vmul.f32 %v2306, %v2149
        %v2318 = vmul.f32 %v2310, %v2152
        %v2319 = vmul.f32 %v2310, %v2153
        %v2320 = vmul.f32 %v2310, %v2149
        %2330 = vrot.lane.b32.xlu0 %v2312, 93
        %v2331 = vpop.permute.xlu0 %2330
        %2332 = vrot.lane.b32.xlu0 %v2313, 93
        %v2333 = vpop.permute.xlu0 %2332
        %2334 = vrot.lane.b32.xlu0 %v2314, 93
        %v2335 = vpop.permute.xlu0 %2334
        %2336 = vrot.lane.b32.xlu0 %v2315, 93
        %v2337 = vpop.permute.xlu0 %2336
        %2338 = vrot.lane.b32.xlu0 %v2316, 93
        %v2339 = vpop.permute.xlu0 %2338
        %2340 = vrot.lane.b32.xlu0 %v2317, 93
        %v2341 = vpop.permute.xlu0 %2340
        %2342 = vrot.lane.b32.xlu0 %v2318, 93
        %v2343 = vpop.permute.xlu0 %2342
        %2344 = vrot.lane.b32.xlu0 %v2319, 93
        %v2345 = vpop.permute.xlu0 %2344
        %2346 = vrot.lane.b32.xlu0 %v2320, 93
        %v2347 = vpop.permute.xlu0 %2346
        %vm2348 = vcmask 760832
        %v2349 = vsel %vm2348, %v2331, %v2333
        %v2350 = vsel %vm2348, %v2333, %v2335
        %v2351 = vsel %vm2348, %v2337, %v2339
        %v2352 = vsel %vm2348, %v2339, %v2341
        %v2353 = vsel %vm2348, %v2343, %v2345
        %v2354 = vsel %vm2348, %v2345, %v2347
        %v2364 = vadd.f32 %v2291, %v2331
        %v2365 = vadd.f32 %v2292, %v2349
        %v2366 = vadd.f32 %v2293, %v2350
        %v2367 = vadd.f32 %v2294, %v2337
        %v2368 = vadd.f32 %v2295, %v2351
        %v2369 = vadd.f32 %v2296, %v2352
        %v2370 = vadd.f32 %v2297, %v2343
        %v2371 = vadd.f32 %v2298, %v2353
        %v2372 = vadd.f32 %v2299, %v2354
        %2373 = vset.pattern.permute.xlu0 20
        %2374 = vperm.xlu0 %2373, %v344
        %v2375 = vpop.permute.xlu0 %2374
        %2377 = vset.pattern.permute.xlu0 20
        %2378 = vperm.xlu0 %2377, %v345
        %v2379 = vpop.permute.xlu0 %2378
        %2381 = vset.pattern.permute.xlu0 20
        %2382 = vperm.xlu0 %2381, %v346
        %v2383 = vpop.permute.xlu0 %2382
        %v2385 = vmul.f32 %v2375, %v2147
        %v2386 = vmul.f32 %v2375, %v2148
        %v2387 = vmul.f32 %v2375, %v2149
        %v2388 = vmul.f32 %v2379, %v2150
        %v2389 = vmul.f32 %v2379, %v2151
        %v2390 = vmul.f32 %v2379, %v2149
        %v2391 = vmul.f32 %v2383, %v2152
        %v2392 = vmul.f32 %v2383, %v2153
        %v2393 = vmul.f32 %v2383, %v2149
        %2403 = vrot.lane.b32.xlu0 %v2385, 77
        %v2404 = vpop.permute.xlu0 %2403
        %2405 = vrot.lane.b32.xlu0 %v2386, 77
        %v2406 = vpop.permute.xlu0 %2405
        %2407 = vrot.lane.b32.xlu0 %v2387, 77
        %v2408 = vpop.permute.xlu0 %2407
        %2409 = vrot.lane.b32.xlu0 %v2388, 77
        %v2410 = vpop.permute.xlu0 %2409
        %2411 = vrot.lane.b32.xlu0 %v2389, 77
        %v2412 = vpop.permute.xlu0 %2411
        %2413 = vrot.lane.b32.xlu0 %v2390, 77
        %v2414 = vpop.permute.xlu0 %2413
        %2415 = vrot.lane.b32.xlu0 %v2391, 77
        %v2416 = vpop.permute.xlu0 %2415
        %2417 = vrot.lane.b32.xlu0 %v2392, 77
        %v2418 = vpop.permute.xlu0 %2417
        %2419 = vrot.lane.b32.xlu0 %v2393, 77
        %v2420 = vpop.permute.xlu0 %2419
        %vm2421 = vcmask 629760
        %v2422 = vsel %vm2421, %v2404, %v2406
        %v2423 = vsel %vm2421, %v2406, %v2408
        %v2424 = vsel %vm2421, %v2410, %v2412
        %v2425 = vsel %vm2421, %v2412, %v2414
        %v2426 = vsel %vm2421, %v2416, %v2418
        %v2427 = vsel %vm2421, %v2418, %v2420
        %v2437 = vadd.f32 %v2364, %v2404
        %v2438 = vadd.f32 %v2365, %v2422
        %v2439 = vadd.f32 %v2366, %v2423
        %v2440 = vadd.f32 %v2367, %v2410
        %v2441 = vadd.f32 %v2368, %v2424
        %v2442 = vadd.f32 %v2369, %v2425
        %v2443 = vadd.f32 %v2370, %v2416
        %v2444 = vadd.f32 %v2371, %v2426
        %v2445 = vadd.f32 %v2372, %v2427
        %2446 = vset.pattern.permute.xlu0 25
        %2447 = vperm.xlu0 %2446, %v344
        %v2448 = vpop.permute.xlu0 %2447
        %2450 = vset.pattern.permute.xlu0 25
        %2451 = vperm.xlu0 %2450, %v345
        %v2452 = vpop.permute.xlu0 %2451
        %2454 = vset.pattern.permute.xlu0 25
        %2455 = vperm.xlu0 %2454, %v346
        %v2456 = vpop.permute.xlu0 %2455
        %v2458 = vmul.f32 %v2448, %v2147
        %v2459 = vmul.f32 %v2448, %v2148
        %v2460 = vmul.f32 %v2448, %v2149
        %v2461 = vmul.f32 %v2452, %v2150
        %v2462 = vmul.f32 %v2452, %v2151
        %v2463 = vmul.f32 %v2452, %v2149
        %v2464 = vmul.f32 %v2456, %v2152
        %v2465 = vmul.f32 %v2456, %v2153
        %v2466 = vmul.f32 %v2456, %v2149
        %2476 = vrot.lane.b32.xlu0 %v2458, 61
        %v2477 = vpop.permute.xlu0 %2476
        %2478 = vrot.lane.b32.xlu0 %v2459, 61
        %v2479 = vpop.permute.xlu0 %2478
        %2480 = vrot.lane.b32.xlu0 %v2460, 61
        %v2481 = vpop.permute.xlu0 %2480
        %2482 = vrot.lane.b32.xlu0 %v2461, 61
        %v2483 = vpop.permute.xlu0 %2482
        %2484 = vrot.lane.b32.xlu0 %v2462, 61
        %v2485 = vpop.permute.xlu0 %2484
        %2486 = vrot.lane.b32.xlu0 %v2463, 61
        %v2487 = vpop.permute.xlu0 %2486
        %2488 = vrot.lane.b32.xlu0 %v2464, 61
        %v2489 = vpop.permute.xlu0 %2488
        %2490 = vrot.lane.b32.xlu0 %v2465, 61
        %v2491 = vpop.permute.xlu0 %2490
        %2492 = vrot.lane.b32.xlu0 %v2466, 61
        %v2493 = vpop.permute.xlu0 %2492
        %vm2494 = vcmask 498688
        %v2495 = vsel %vm2494, %v2477, %v2479
        %v2496 = vsel %vm2494, %v2479, %v2481
        %v2497 = vsel %vm2494, %v2483, %v2485
        %v2498 = vsel %vm2494, %v2485, %v2487
        %v2499 = vsel %vm2494, %v2489, %v2491
        %v2500 = vsel %vm2494, %v2491, %v2493
        %v2510 = vadd.f32 %v2437, %v2477
        %v2511 = vadd.f32 %v2438, %v2495
        %v2512 = vadd.f32 %v2439, %v2496
        %v2513 = vadd.f32 %v2440, %v2483
        %v2514 = vadd.f32 %v2441, %v2497
        %v2515 = vadd.f32 %v2442, %v2498
        %v2516 = vadd.f32 %v2443, %v2489
        %v2517 = vadd.f32 %v2444, %v2499
        %v2518 = vadd.f32 %v2445, %v2500
        %v2519 = vlaneseq
        %v2520 = vshrl.u32 %v2519, 7
        %v2521 = vsub.s32 4, %v2520
        %v2522 = vrot.slane %v1050, %v2521
        %v2523 = vlaneseq
        %v2524 = vshrl.u32 %v2523, 7
        %v2525 = vsub.s32 4, %v2524
        %v2526 = vrot.slane %v1051, %v2525
        %v2527 = vlaneseq
        %v2528 = vshrl.u32 %v2527, 7
        %v2529 = vsub.s32 4, %v2528
        %v2530 = vrot.slane %v1052, %v2529
        %v2531 = vlaneseq
        %v2532 = vshrl.u32 %v2531, 7
        %v2533 = vsub.s32 4, %v2532
        %v2534 = vrot.slane %v1053, %v2533
        %v2535 = vmul.f32 %v2522, 0.0
        %v2536 = vmul.f32 %v2526, %v1044
        %v2537 = vmul.f32 %v2530, %v1045
        %v2538 = vmul.f32 %v2534, 0.0
        %v2539 = vmul.f32 %v2526, %v1046
        %v2540 = vmul.f32 %v2530, %v1047
        %v2541 = vmul.f32 %v2526, %v1048
        %v2542 = vmul.f32 %v2530, %v1049
        %2543 = vset.pattern.permute.xlu0 6
        %2544 = vperm.xlu0 %2543, %v344
        %v2545 = vpop.permute.xlu0 %2544
        %2547 = vset.pattern.permute.xlu0 6
        %2548 = vperm.xlu0 %2547, %v345
        %v2549 = vpop.permute.xlu0 %2548
        %2551 = vset.pattern.permute.xlu0 6
        %2552 = vperm.xlu0 %2551, %v346
        %v2553 = vpop.permute.xlu0 %2552
        %v2555 = vmul.f32 %v2545, %v2535
        %v2556 = vmul.f32 %v2545, %v2536
        %v2557 = vmul.f32 %v2545, %v2537
        %v2558 = vmul.f32 %v2549, %v2535
        %v2559 = vmul.f32 %v2549, %v2539
        %v2560 = vmul.f32 %v2549, %v2540
        %v2561 = vmul.f32 %v2553, %v2535
        %v2562 = vmul.f32 %v2553, %v2541
        %v2563 = vmul.f32 %v2553, %v2542
        %2573 = vrot.lane.b32.xlu0 %v2555, 124
        %v2574 = vpop.permute.xlu0 %2573
        %2575 = vrot.lane.b32.xlu0 %v2556, 124
        %v2576 = vpop.permute.xlu0 %2575
        %2577 = vrot.lane.b32.xlu0 %v2557, 124
        %v2578 = vpop.permute.xlu0 %2577
        %2579 = vrot.lane.b32.xlu0 %v2558, 124
        %v2580 = vpop.permute.xlu0 %2579
        %2581 = vrot.lane.b32.xlu0 %v2559, 124
        %v2582 = vpop.permute.xlu0 %2581
        %2583 = vrot.lane.b32.xlu0 %v2560, 124
        %v2584 = vpop.permute.xlu0 %2583
        %2585 = vrot.lane.b32.xlu0 %v2561, 124
        %v2586 = vpop.permute.xlu0 %2585
        %2587 = vrot.lane.b32.xlu0 %v2562, 124
        %v2588 = vpop.permute.xlu0 %2587
        %2589 = vrot.lane.b32.xlu0 %v2563, 124
        %v2590 = vpop.permute.xlu0 %2589
        %vm2591 = vcmask 1014784
        %v2592 = vsel %vm2591, %v2574, %v2576
        %v2593 = vsel %vm2591, %v2576, %v2578
        %v2594 = vsel %vm2591, %v2580, %v2582
        %v2595 = vsel %vm2591, %v2582, %v2584
        %v2596 = vsel %vm2591, %v2586, %v2588
        %v2597 = vsel %vm2591, %v2588, %v2590
        %v2607 = vadd.f32 %v2510, %v2592
        %v2608 = vadd.f32 %v2511, %v2593
        %v2609 = vadd.f32 %v2512, %v2578
        %v2610 = vadd.f32 %v2513, %v2594
        %v2611 = vadd.f32 %v2514, %v2595
        %v2612 = vadd.f32 %v2515, %v2584
        %v2613 = vadd.f32 %v2516, %v2596
        %v2614 = vadd.f32 %v2517, %v2597
        %v2615 = vadd.f32 %v2518, %v2590
        %2616 = vset.pattern.permute.xlu0 11
        %2617 = vperm.xlu0 %2616, %v344
        %v2618 = vpop.permute.xlu0 %2617
        %2620 = vset.pattern.permute.xlu0 11
        %2621 = vperm.xlu0 %2620, %v345
        %v2622 = vpop.permute.xlu0 %2621
        %2624 = vset.pattern.permute.xlu0 11
        %2625 = vperm.xlu0 %2624, %v346
        %v2626 = vpop.permute.xlu0 %2625
        %v2628 = vmul.f32 %v2618, %v2535
        %v2629 = vmul.f32 %v2618, %v2536
        %v2630 = vmul.f32 %v2618, %v2537
        %v2631 = vmul.f32 %v2622, %v2535
        %v2632 = vmul.f32 %v2622, %v2539
        %v2633 = vmul.f32 %v2622, %v2540
        %v2634 = vmul.f32 %v2626, %v2535
        %v2635 = vmul.f32 %v2626, %v2541
        %v2636 = vmul.f32 %v2626, %v2542
        %2646 = vrot.lane.b32.xlu0 %v2628, 108
        %v2647 = vpop.permute.xlu0 %2646
        %2648 = vrot.lane.b32.xlu0 %v2629, 108
        %v2649 = vpop.permute.xlu0 %2648
        %2650 = vrot.lane.b32.xlu0 %v2630, 108
        %v2651 = vpop.permute.xlu0 %2650
        %2652 = vrot.lane.b32.xlu0 %v2631, 108
        %v2653 = vpop.permute.xlu0 %2652
        %2654 = vrot.lane.b32.xlu0 %v2632, 108
        %v2655 = vpop.permute.xlu0 %2654
        %2656 = vrot.lane.b32.xlu0 %v2633, 108
        %v2657 = vpop.permute.xlu0 %2656
        %2658 = vrot.lane.b32.xlu0 %v2634, 108
        %v2659 = vpop.permute.xlu0 %2658
        %2660 = vrot.lane.b32.xlu0 %v2635, 108
        %v2661 = vpop.permute.xlu0 %2660
        %2662 = vrot.lane.b32.xlu0 %v2636, 108
        %v2663 = vpop.permute.xlu0 %2662
        %vm2664 = vcmask 883712
        %v2665 = vsel %vm2664, %v2647, %v2649
        %v2666 = vsel %vm2664, %v2649, %v2651
        %v2667 = vsel %vm2664, %v2653, %v2655
        %v2668 = vsel %vm2664, %v2655, %v2657
        %v2669 = vsel %vm2664, %v2659, %v2661
        %v2670 = vsel %vm2664, %v2661, %v2663
        %v2680 = vadd.f32 %v2607, %v2665
        %v2681 = vadd.f32 %v2608, %v2666
        %v2682 = vadd.f32 %v2609, %v2651
        %v2683 = vadd.f32 %v2610, %v2667
        %v2684 = vadd.f32 %v2611, %v2668
        %v2685 = vadd.f32 %v2612, %v2657
        %v2686 = vadd.f32 %v2613, %v2669
        %v2687 = vadd.f32 %v2614, %v2670
        %v2688 = vadd.f32 %v2615, %v2663
        %2689 = vset.pattern.permute.xlu0 16
        %2690 = vperm.xlu0 %2689, %v344
        %v2691 = vpop.permute.xlu0 %2690
        %2693 = vset.pattern.permute.xlu0 16
        %2694 = vperm.xlu0 %2693, %v345
        %v2695 = vpop.permute.xlu0 %2694
        %2697 = vset.pattern.permute.xlu0 16
        %2698 = vperm.xlu0 %2697, %v346
        %v2699 = vpop.permute.xlu0 %2698
        %v2701 = vmul.f32 %v2691, %v2536
        %v2702 = vmul.f32 %v2691, %v2537
        %v2703 = vmul.f32 %v2691, %v2538
        %v2704 = vmul.f32 %v2695, %v2539
        %v2705 = vmul.f32 %v2695, %v2540
        %v2706 = vmul.f32 %v2695, %v2538
        %v2707 = vmul.f32 %v2699, %v2541
        %v2708 = vmul.f32 %v2699, %v2542
        %v2709 = vmul.f32 %v2699, %v2538
        %2719 = vrot.lane.b32.xlu0 %v2701, 92
        %v2720 = vpop.permute.xlu0 %2719
        %2721 = vrot.lane.b32.xlu0 %v2702, 92
        %v2722 = vpop.permute.xlu0 %2721
        %2723 = vrot.lane.b32.xlu0 %v2703, 92
        %v2724 = vpop.permute.xlu0 %2723
        %2725 = vrot.lane.b32.xlu0 %v2704, 92
        %v2726 = vpop.permute.xlu0 %2725
        %2727 = vrot.lane.b32.xlu0 %v2705, 92
        %v2728 = vpop.permute.xlu0 %2727
        %2729 = vrot.lane.b32.xlu0 %v2706, 92
        %v2730 = vpop.permute.xlu0 %2729
        %2731 = vrot.lane.b32.xlu0 %v2707, 92
        %v2732 = vpop.permute.xlu0 %2731
        %2733 = vrot.lane.b32.xlu0 %v2708, 92
        %v2734 = vpop.permute.xlu0 %2733
        %2735 = vrot.lane.b32.xlu0 %v2709, 92
        %v2736 = vpop.permute.xlu0 %2735
        %vm2737 = vcmask 752640
        %v2738 = vsel %vm2737, %v2720, %v2722
        %v2739 = vsel %vm2737, %v2722, %v2724
        %v2740 = vsel %vm2737, %v2726, %v2728
        %v2741 = vsel %vm2737, %v2728, %v2730
        %v2742 = vsel %vm2737, %v2732, %v2734
        %v2743 = vsel %vm2737, %v2734, %v2736
        %v2753 = vadd.f32 %v2680, %v2720
        %v2754 = vadd.f32 %v2681, %v2738
        %v2755 = vadd.f32 %v2682, %v2739
        %v2756 = vadd.f32 %v2683, %v2726
        %v2757 = vadd.f32 %v2684, %v2740
        %v2758 = vadd.f32 %v2685, %v2741
        %v2759 = vadd.f32 %v2686, %v2732
        %v2760 = vadd.f32 %v2687, %v2742
        %v2761 = vadd.f32 %v2688, %v2743
        %2762 = vset.pattern.permute.xlu0 21
        %2763 = vperm.xlu0 %2762, %v344
        %v2764 = vpop.permute.xlu0 %2763
        %2766 = vset.pattern.permute.xlu0 21
        %2767 = vperm.xlu0 %2766, %v345
        %v2768 = vpop.permute.xlu0 %2767
        %2770 = vset.pattern.permute.xlu0 21
        %2771 = vperm.xlu0 %2770, %v346
        %v2772 = vpop.permute.xlu0 %2771
        %v2774 = vmul.f32 %v2764, %v2536
        %v2775 = vmul.f32 %v2764, %v2537
        %v2776 = vmul.f32 %v2764, %v2538
        %v2777 = vmul.f32 %v2768, %v2539
        %v2778 = vmul.f32 %v2768, %v2540
        %v2779 = vmul.f32 %v2768, %v2538
        %v2780 = vmul.f32 %v2772, %v2541
        %v2781 = vmul.f32 %v2772, %v2542
        %v2782 = vmul.f32 %v2772, %v2538
        %2792 = vrot.lane.b32.xlu0 %v2774, 76
        %v2793 = vpop.permute.xlu0 %2792
        %2794 = vrot.lane.b32.xlu0 %v2775, 76
        %v2795 = vpop.permute.xlu0 %2794
        %2796 = vrot.lane.b32.xlu0 %v2776, 76
        %v2797 = vpop.permute.xlu0 %2796
        %2798 = vrot.lane.b32.xlu0 %v2777, 76
        %v2799 = vpop.permute.xlu0 %2798
        %2800 = vrot.lane.b32.xlu0 %v2778, 76
        %v2801 = vpop.permute.xlu0 %2800
        %2802 = vrot.lane.b32.xlu0 %v2779, 76
        %v2803 = vpop.permute.xlu0 %2802
        %2804 = vrot.lane.b32.xlu0 %v2780, 76
        %v2805 = vpop.permute.xlu0 %2804
        %2806 = vrot.lane.b32.xlu0 %v2781, 76
        %v2807 = vpop.permute.xlu0 %2806
        %2808 = vrot.lane.b32.xlu0 %v2782, 76
        %v2809 = vpop.permute.xlu0 %2808
        %vm2810 = vcmask 621568
        %v2811 = vsel %vm2810, %v2793, %v2795
        %v2812 = vsel %vm2810, %v2795, %v2797
        %v2813 = vsel %vm2810, %v2799, %v2801
        %v2814 = vsel %vm2810, %v2801, %v2803
        %v2815 = vsel %vm2810, %v2805, %v2807
        %v2816 = vsel %vm2810, %v2807, %v2809
        %v2826 = vadd.f32 %v2753, %v2793
        %v2827 = vadd.f32 %v2754, %v2811
        %v2828 = vadd.f32 %v2755, %v2812
        %v2829 = vadd.f32 %v2756, %v2799
        %v2830 = vadd.f32 %v2757, %v2813
        %v2831 = vadd.f32 %v2758, %v2814
        %v2832 = vadd.f32 %v2759, %v2805
        %v2833 = vadd.f32 %v2760, %v2815
        %v2834 = vadd.f32 %v2761, %v2816
        %2835 = vset.pattern.permute.xlu0 26
        %2836 = vperm.xlu0 %2835, %v344
        %v2837 = vpop.permute.xlu0 %2836
        %2839 = vset.pattern.permute.xlu0 26
        %2840 = vperm.xlu0 %2839, %v345
        %v2841 = vpop.permute.xlu0 %2840
        %2843 = vset.pattern.permute.xlu0 26
        %2844 = vperm.xlu0 %2843, %v346
        %v2845 = vpop.permute.xlu0 %2844
        %v2847 = vmul.f32 %v2837, %v2536
        %v2848 = vmul.f32 %v2837, %v2537
        %v2849 = vmul.f32 %v2837, %v2538
        %v2850 = vmul.f32 %v2841, %v2539
        %v2851 = vmul.f32 %v2841, %v2540
        %v2852 = vmul.f32 %v2841, %v2538
        %v2853 = vmul.f32 %v2845, %v2541
        %v2854 = vmul.f32 %v2845, %v2542
        %v2855 = vmul.f32 %v2845, %v2538
        %2865 = vrot.lane.b32.xlu0 %v2847, 60
        %v2866 = vpop.permute.xlu0 %2865
        %2867 = vrot.lane.b32.xlu0 %v2848, 60
        %v2868 = vpop.permute.xlu0 %2867
        %2869 = vrot.lane.b32.xlu0 %v2849, 60
        %v2870 = vpop.permute.xlu0 %2869
        %2871 = vrot.lane.b32.xlu0 %v2850, 60
        %v2872 = vpop.permute.xlu0 %2871
        %2873 = vrot.lane.b32.xlu0 %v2851, 60
        %v2874 = vpop.permute.xlu0 %2873
        %2875 = vrot.lane.b32.xlu0 %v2852, 60
        %v2876 = vpop.permute.xlu0 %2875
        %2877 = vrot.lane.b32.xlu0 %v2853, 60
        %v2878 = vpop.permute.xlu0 %2877
        %2879 = vrot.lane.b32.xlu0 %v2854, 60
        %v2880 = vpop.permute.xlu0 %2879
        %2881 = vrot.lane.b32.xlu0 %v2855, 60
        %v2882 = vpop.permute.xlu0 %2881
        %vm2883 = vcmask 490496
        %v2884 = vsel %vm2883, %v2866, %v2868
        %v2885 = vsel %vm2883, %v2868, %v2870
        %v2886 = vsel %vm2883, %v2872, %v2874
        %v2887 = vsel %vm2883, %v2874, %v2876
        %v2888 = vsel %vm2883, %v2878, %v2880
        %v2889 = vsel %vm2883, %v2880, %v2882
        %v2899 = vadd.f32 %v2826, %v2866
        %v2900 = vadd.f32 %v2827, %v2884
        %v2901 = vadd.f32 %v2828, %v2885
        %v2902 = vadd.f32 %v2829, %v2872
        %v2903 = vadd.f32 %v2830, %v2886
        %v2904 = vadd.f32 %v2831, %v2887
        %v2905 = vadd.f32 %v2832, %v2878
        %v2906 = vadd.f32 %v2833, %v2888
        %v2907 = vadd.f32 %v2834, %v2889
        %2908 = vset.pattern.permute.xlu0 27
        %2909 = vperm.xlu0 %2908, %v344
        %v2910 = vpop.permute.xlu0 %2909
        %2912 = vset.pattern.permute.xlu0 27
        %2913 = vperm.xlu0 %2912, %v345
        %v2914 = vpop.permute.xlu0 %2913
        %2916 = vset.pattern.permute.xlu0 27
        %2917 = vperm.xlu0 %2916, %v346
        %v2918 = vpop.permute.xlu0 %2917
        %v2920 = vmul.f32 %v2899, %v2910
        %v2921 = vmul.f32 %v2900, %v2910
        %v2922 = vmul.f32 %v2901, %v2910
        %v2923 = vmul.f32 %v2902, %v2914
        %v2924 = vmul.f32 %v2903, %v2914
        %v2925 = vmul.f32 %v2904, %v2914
        %v2926 = vmul.f32 %v2905, %v2918
        %v2927 = vmul.f32 %v2906, %v2918
        %v2928 = vmul.f32 %v2907, %v2918
        %2929 = vset.pattern.permute.xlu0 28
        %2930 = vperm.xlu0 %2929, %v344
        %v2931 = vpop.permute.xlu0 %2930
        %2933 = vset.pattern.permute.xlu0 28
        %2934 = vperm.xlu0 %2933, %v345
        %v2935 = vpop.permute.xlu0 %2934
        %2937 = vset.pattern.permute.xlu0 28
        %2938 = vperm.xlu0 %2937, %v346
        %v2939 = vpop.permute.xlu0 %2938
        %v2941 = vadd.f32 %v2920, %v2931
        %v2942 = vadd.f32 %v2921, %v2931
        %v2943 = vadd.f32 %v2922, %v2931
        %v2944 = vadd.f32 %v2923, %v2935
        %v2945 = vadd.f32 %v2924, %v2935
        %v2946 = vadd.f32 %v2925, %v2935
        %v2947 = vadd.f32 %v2926, %v2939
        %v2948 = vadd.f32 %v2927, %v2939
        %v2949 = vadd.f32 %v2928, %v2939
        %v2950 = vmul.f32 %v2941, 0.5
        %v2951 = vmul.f32 %v2942, 0.5
        %v2952 = vmul.f32 %v2943, 0.5
        %v2953 = vmul.f32 %v2944, 0.5
        %v2954 = vmul.f32 %v2945, 0.5
        %v2955 = vmul.f32 %v2946, 0.5
        %v2956 = vmul.f32 %v2947, 0.5
        %v2957 = vmul.f32 %v2948, 0.5
        %v2958 = vmul.f32 %v2949, 0.5
        %v2959 = vtanh.pop %v2950
        %v2960 = vtanh.pop %v2951
        %v2961 = vtanh.pop %v2952
        %v2962 = vtanh.pop %v2953
        %v2963 = vtanh.pop %v2954
        %v2964 = vtanh.pop %v2955
        %v2965 = vtanh.pop %v2956
        %v2966 = vtanh.pop %v2957
        %v2967 = vtanh.pop %v2958
        %v2968 = vmul.f32 %v2959, 0.5
        %v2969 = vmul.f32 %v2960, 0.5
        %v2970 = vmul.f32 %v2961, 0.5
        %v2971 = vmul.f32 %v2962, 0.5
        %v2972 = vmul.f32 %v2963, 0.5
        %v2973 = vmul.f32 %v2964, 0.5
        %v2974 = vmul.f32 %v2965, 0.5
        %v2975 = vmul.f32 %v2966, 0.5
        %v2976 = vmul.f32 %v2967, 0.5
        %v2977 = vadd.f32 %v2968, 0.5
        %v2978 = vadd.f32 %v2969, 0.5
        %v2979 = vadd.f32 %v2970, 0.5
        %v2980 = vadd.f32 %v2971, 0.5
        %v2981 = vadd.f32 %v2972, 0.5
        %v2982 = vadd.f32 %v2973, 0.5
        %v2983 = vadd.f32 %v2974, 0.5
        %v2984 = vadd.f32 %v2975, 0.5
        %v2985 = vadd.f32 %v2976, 0.5
        %v2986 = vmul.f32 %v2941, %v2977
        %v2987 = vmul.f32 %v2942, %v2978
        %v2988 = vmul.f32 %v2943, %v2979
        %v2989 = vmul.f32 %v2944, %v2980
        %v2990 = vmul.f32 %v2945, %v2981
        %v2991 = vmul.f32 %v2946, %v2982
        %v2992 = vmul.f32 %v2947, %v2983
        %v2993 = vmul.f32 %v2948, %v2984
        %v2994 = vmul.f32 %v2949, %v2985
        %2995 = vset.pattern.permute.xlu0 29
        %2996 = vperm.xlu0 %2995, %v344
        %v2997 = vpop.permute.xlu0 %2996
        %2999 = vset.pattern.permute.xlu0 29
        %3000 = vperm.xlu0 %2999, %v345
        %v3001 = vpop.permute.xlu0 %3000
        %3003 = vset.pattern.permute.xlu0 29
        %3004 = vperm.xlu0 %3003, %v346
        %v3005 = vpop.permute.xlu0 %3004
        %v3007 = vmul.f32 %v2997, %v1044
        %v3008 = vmul.f32 %v2997, %v1045
        %v3009 = vmul.f32 %v3001, %v1046
        %v3010 = vmul.f32 %v3001, %v1047
        %v3011 = vmul.f32 %v3005, %v1048
        %v3012 = vmul.f32 %v3005, %v1049
        %v3013 = vsub.f32 1.0, %v344
        %v3014 = vsub.f32 1.0, %v345
        %v3015 = vsub.f32 1.0, %v346
        %3017 = vset.pattern.permute.xlu0 29
        %3018 = vperm.xlu0 %3017, %v3013
        %v3019 = vpop.permute.xlu0 %3018
        %3022 = vset.pattern.permute.xlu0 29
        %3023 = vperm.xlu0 %3022, %v3014
        %v3024 = vpop.permute.xlu0 %3023
        %3027 = vset.pattern.permute.xlu0 29
        %3028 = vperm.xlu0 %3027, %v3015
        %v3029 = vpop.permute.xlu0 %3028
        %v3031 = vmul.f32 %v3019, %v2986
        %v3032 = vmul.f32 %v3019, %v2987
        %v3033 = vmul.f32 %v3019, %v2988
        %v3034 = vmul.f32 %v3024, %v2989
        %v3035 = vmul.f32 %v3024, %v2990
        %v3036 = vmul.f32 %v3024, %v2991
        %v3037 = vmul.f32 %v3029, %v2992
        %v3038 = vmul.f32 %v3029, %v2993
        %v3039 = vmul.f32 %v3029, %v2994
        %3049 = vrot.lane.b32.xlu0 %v3031, 34
        %v3050 = vpop.permute.xlu0 %3049
        %3051 = vrot.lane.b32.xlu0 %v3032, 34
        %v3052 = vpop.permute.xlu0 %3051
        %3053 = vrot.lane.b32.xlu0 %v3033, 34
        %v3054 = vpop.permute.xlu0 %3053
        %3055 = vrot.lane.b32.xlu0 %v3034, 34
        %v3056 = vpop.permute.xlu0 %3055
        %3057 = vrot.lane.b32.xlu0 %v3035, 34
        %v3058 = vpop.permute.xlu0 %3057
        %3059 = vrot.lane.b32.xlu0 %v3036, 34
        %v3060 = vpop.permute.xlu0 %3059
        %3061 = vrot.lane.b32.xlu0 %v3037, 34
        %v3062 = vpop.permute.xlu0 %3061
        %3063 = vrot.lane.b32.xlu0 %v3038, 34
        %v3064 = vpop.permute.xlu0 %3063
        %3065 = vrot.lane.b32.xlu0 %v3039, 34
        %v3066 = vpop.permute.xlu0 %3065
        %vm3067 = vcmask 277504
        %v3068 = vsel %vm3067, %v3050, %v3052
        %v3069 = vsel %vm3067, %v3052, %v3054
        %v3070 = vsel %vm3067, %v3056, %v3058
        %v3071 = vsel %vm3067, %v3058, %v3060
        %v3072 = vsel %vm3067, %v3062, %v3064
        %v3073 = vsel %vm3067, %v3064, %v3066
        %v3080 = vadd.f32 %v3007, %v3068
        %v3081 = vadd.f32 %v3008, %v3069
        %v3082 = vadd.f32 %v3009, %v3070
        %v3083 = vadd.f32 %v3010, %v3071
        %v3084 = vadd.f32 %v3011, %v3072
        %v3085 = vadd.f32 %v3012, %v3073
        %v3086 = vmul.f32 %v3080, %v3082
        %v3087 = vmul.f32 %v3081, %v3083
        %v3088 = vmul.f32 %v3086, %v3084
        %v3089 = vmul.f32 %v3087, %v3085
        %3090 = vst [vmem:[%s328] sm:$0xff] %v3088
        %3091 = vst [vmem:[%s328 + $0x8] sm:$0xff] %v3089
        %s3092 = sand.u32 %s213, 1
        %s3093 = scalar_lea.sflag [#allocation3], %s3092
        %s3094 = sand.u32 %s213, 1
        %s3095 = smul.addr %s3094, 16
        %s3096 = scalar_lea.vmem [#allocation2], %s3095
        // Predicated region
        $region53: #{tpu_custom_call.1} parent=51 // pred_check
          %p3097 = pneg %p223
        $region54: #{tpu_custom_call.1} parent=51 // pred_check_branch
          %3099 = sbr.rel (%p3097) target = $region56
        $region55: #{tpu_custom_call.1} parent=51 // pred_region
          %s3101 = ssub.s32 256, 256
          %3102 = vsyncadd %s3093, %s3101
          %s3103 = smul.addr %s22, 2
          %s3104 = smul.addr %s3103, 128
          %s3105 = scalar_lea.hbm %s8, %s3104
          %s3107 = sshll.u32 %s3096, 4
          %s3108 = int_to_ptr.vmem [resolvable:$true] %s3107
          %3110 = dma.vmem_to_hbm [thread:$0]  %s3108, 256, %s3105, %s3093
        $region56: #{tpu_custom_call.1} parent=51 // pred_fallthru
          _
      $region52: #{tpu_custom_call.1} parent=5 // pred_fallthru
        _
      %p3111 = scmp.le.s32.totalorder 2, %s17
      // Predicated region
      $region57: #{tpu_custom_call.1} parent=5 // pred_check
        %p3112 = pneg %p3111
      $region58: #{tpu_custom_call.1} parent=5 // pred_check_branch
        %3114 = sbr.rel (%p3112) target = $region60
      $region59: #{tpu_custom_call.1} parent=5 // pred_region
        %s3115 = ssub.s32 %s17, 2
        // Predicated region
        $region61: #{tpu_custom_call.1} parent=59 // pred_check
          %p3116 = pneg %p229
        $region62: #{tpu_custom_call.1} parent=59 // pred_check_branch
          %3118 = sbr.rel (%p3116) target = $region64
        $region63: #{tpu_custom_call.1} parent=59 // pred_region
          %s3119 = sand.u32 %s214, 1
          %s3120 = scalar_lea.sflag [#allocation3], %s3119
          %s3121 = sand.u32 %s214, 1
          %s3122 = smul.addr %s3121, 16
          %s3123 = scalar_lea.vmem [#allocation2], %s3122
          %3124 = dma.done %s3120, 256
        $region64: #{tpu_custom_call.1} parent=59 // pred_fallthru
          _
      $region60: #{tpu_custom_call.1} parent=5 // pred_fallthru
        _
    $region6: #{tpu_custom_call.1} parent=1 // loop_footer
      %s21 = sadd.s32 1, %s17
    $region7: #{tpu_custom_call.1} parent=1 // loop_footer_branch
      %16 = sbr.rel target = $region3
    $region8: #{tpu_custom_call.1} parent=1 // loop_exit
      _
    %3125 = vsyncpa [#allocation3], 1
    %s3126 = scalar_lea.sflag [#allocation3], 1
    %3127 = vsyncpa %s3126, 1

</llo_original>
